<compile_context>
chip_gen: v7x
topology: tpu7x:2x2x1
jax: 0.10.0
libtpu: 0.0.40
codegen_flags: <defaults>
</compile_context>

<pallas_src>
import functools

import jax
import jax.numpy as jnp
from jax.experimental import pallas as pl
from jax.experimental.pallas import tpu as pltpu

EPS = 1e-5  # nn.InstanceNorm2d default eps

_PAD_MODE = {"zero": "constant", "reflect": "reflect", "replicate": "edge"}


# ---------------------------------------------------------------------------
# Fused kernel: conv (shifted-slice matmuls) + bias + instance-norm + activation
# ---------------------------------------------------------------------------
def _conv2d_block_kernel(x_ref, w_ref, b_ref, o_ref, *, KH, KW, Ho, Wo, stride, norm, act):
    # x_ref: (1, Hp, Wp, Cin)    bf16  padded NHWC input, one sample
    # w_ref: (KH, KW*Cin, Cout)  bf16  conv weight grouped per kernel row
    # b_ref: (1, Cout)           f32
    # o_ref: (1, Cout, Ho*Wo)    f32   lane-dense along H*W (== NCHW flattened)
    x = x_ref[0]                                   # (Hp, Wp, Cin)
    cin = x.shape[-1]
    cout = o_ref.shape[1]
    hw = Ho * Wo

    def _win(v, axis, k, n):
        # n stride-strided positions starting at element k along `axis`
        if stride == 1:
            sl = slice(k, k + n)
        else:  # TODO(synk): stride > 1 path (strided value slice) is less exercised
            sl = slice(k, k + stride * (n - 1) + 1, stride)
        return v[sl] if axis == 0 else v[:, sl]

    # Conv as KH row-grouped matmuls; columns are built from shifted slices in VMEM only.
    acc = jnp.zeros((hw, cout), jnp.float32)
    for kh in range(KH):
        rows = _win(x, 0, kh, Ho)                                  # (Ho, Wp, Cin)
        taps = [_win(rows, 1, kw, Wo) for kw in range(KW)]         # KW x (Ho, Wo, Cin)
        grp = taps[0] if KW == 1 else jnp.concatenate(taps, axis=-1)   # (Ho, Wo, KW*Cin)
        acc += jnp.dot(grp.reshape(hw, KW * cin), w_ref[kh],
                       preferred_element_type=jnp.float32)
    acc += b_ref[...]                                              # (1, Cout) broadcast

    if norm == "in":
        # InstanceNorm2d: per-channel stats over H*W, biased variance, one-pass sum/sumsq.
        inv_hw = 1.0 / hw
        s = jnp.sum(acc, axis=0, keepdims=True)                    # (1, Cout)
        ss = jnp.sum(acc * acc, axis=0, keepdims=True)
        mean = s * inv_hw
        var = jnp.maximum(ss * inv_hw - mean * mean, 0.0)
        acc = (acc - mean) * jax.lax.rsqrt(var + EPS)

    if act == "relu":
        acc = jnp.maximum(acc, 0.0)
    elif act == "lrelu":
        acc = jnp.where(acc >= 0.0, acc, 0.2 * acc)
    elif act == "tanh":
        acc = jnp.tanh(acc)

    # Lane-dense store: last dim is H*W (multiple of 128 at realistic sizes).
    o_ref[0] = acc.T.astype(o_ref.dtype)                           # (Cout, Ho*Wo)


# ---------------------------------------------------------------------------
# Wrapper (PyTorch layouts in/out)
# ---------------------------------------------------------------------------
def conv2d_block(x, w, b, *, stride=1, padding=0, norm="none", act="relu", pad_type="zero"):
    """Conv2dBlock forward.

    x: (N, Cin, H, W) f32 (NCHW), w: (Cout, Cin, KH, KW) f32 (PyTorch Conv2d), b: (Cout,) f32.
    Returns (N, Cout, Ho, Wo) f32.
    """
    if norm not in ("in", "none"):
        raise NotImplementedError(f"norm={norm!r}")  # TODO(synk): 'bn' / 'adain' not supported
    N, Cin, H, W = x.shape
    Cout, _, KH, KW = w.shape
    Hp, Wp = H + 2 * padding, W + 2 * padding
    Ho = (Hp - KH) // stride + 1
    Wo = (Wp - KW) // stride + 1
    HW = Ho * Wo

    # Glue: NCHW -> NHWC + small spatial pad (NO im2col, NO KH*KW amplification in HBM).
    x_nhwc = jnp.transpose(x, (0, 2, 3, 1))
    if padding > 0:
        x_nhwc = jnp.pad(x_nhwc, ((0, 0), (padding, padding), (padding, padding), (0, 0)),
                         mode=_PAD_MODE[pad_type])
    x_nhwc = x_nhwc.astype(jnp.bfloat16)        # halve DMA bytes, native bf16 MXU rate

    # Weight: (Cout, Cin, KH, KW) -> (KH, KW*Cin, Cout), matching the in-kernel tap order.
    w_k = jnp.transpose(w, (2, 3, 1, 0)).reshape(KH, KW * Cin, Cout).astype(jnp.bfloat16)
    b_k = b.reshape(1, Cout).astype(jnp.float32)

    kernel = functools.partial(_conv2d_block_kernel, KH=KH, KW=KW, Ho=Ho, Wo=Wo,
                               stride=stride, norm=norm, act=act)

    flops = 2 * N * HW * (KH * KW * Cin) * Cout
    transc = N * HW * Cout if act == "tanh" else 0
    bytes_accessed = int(x_nhwc.size) * 2 + int(w_k.size) * 2 + Cout * 4 + N * Cout * HW * 4

    out = pl.pallas_call(
        kernel,
        out_shape=jax.ShapeDtypeStruct((N, Cout, HW), jnp.float32),
        grid=(N,),
        in_specs=[
            pl.BlockSpec((1, Hp, Wp, Cin), lambda n: (n, 0, 0, 0)),
            pl.BlockSpec((KH, KW * Cin, Cout), lambda n: (0, 0, 0)),
            pl.BlockSpec((1, Cout), lambda n: (0, 0)),
        ],
        out_specs=pl.BlockSpec((1, Cout, HW), lambda n: (n, 0, 0)),
        compiler_params=pltpu.CompilerParams(dimension_semantics=("parallel",)),
        cost_estimate=pl.CostEstimate(flops=flops, transcendentals=transc,
                                      bytes_accessed=bytes_accessed),
    )(x_nhwc, w_k, b_k)

    return out.reshape(N, Cout, Ho, Wo)  # already NCHW -- no output transpose needed


# ---------------------------------------------------------------------------
# Pure-JAX reference (same bf16 input/weight quantization, f32 accumulation)
# ---------------------------------------------------------------------------
def _reference_conv2d_block(x, w, b, *, stride, padding, norm, act, pad_type):
    xq = x.astype(jnp.bfloat16).astype(jnp.float32)
    wq = w.astype(jnp.bfloat16).astype(jnp.float32)
    if padding > 0:
        xq = jnp.pad(xq, ((0, 0), (0, 0), (padding, padding), (padding, padding)),
                     mode=_PAD_MODE[pad_type])
    y = jax.lax.conv_general_dilated(
        xq, wq, (stride, stride), "VALID",
        dimension_numbers=("NCHW", "OIHW", "NCHW"),
        precision=jax.lax.Precision.HIGHEST,
    ) + b[None, :, None, None]
    if norm == "in":
        mean = jnp.mean(y, axis=(2, 3), keepdims=True)
        var = jnp.mean((y - mean) ** 2, axis=(2, 3), keepdims=True)
        y = (y - mean) / jnp.sqrt(var + EPS)
    if act == "relu":
        y = jnp.maximum(y, 0.0)
    elif act == "lrelu":
        y = jnp.where(y >= 0.0, y, 0.2 * y)
    elif act == "tanh":
        y = jnp.tanh(y)
    return y


if __name__ == "__main__":
    key = jax.random.PRNGKey(0)
    kx, kw1, kb1, kw2, kb2 = jax.random.split(key, 5)

    # Small shapes consistent with the module's use in TUNIT (NCHW input).
    N, Cin, H, W = 2, 4, 16, 16
    x = jax.random.normal(kx, (N, Cin, H, W), jnp.float32)

    def conv_init(kw_key, kb_key, cout, cin, ks):
        bound = float((cin * ks * ks) ** -0.5)  # PyTorch Conv2d uniform init bound
        wgt = jax.random.uniform(kw_key, (cout, cin, ks, ks), jnp.float32, -bound, bound)
        bia = jax.random.uniform(kb_key, (cout,), jnp.float32, -bound, bound)
        return wgt, bia

    # Config 1: 3x3, zero pad 1, InstanceNorm + ReLU (ResBlock-style Conv2dBlock)
    w1, b1 = conv_init(kw1, kb1, 32, Cin, 3)
    fwd1 = jax.jit(functools.partial(conv2d_block, stride=1, padding=1,
                                     norm="in", act="relu", pad_type="zero"))
    out1 = jax.block_until_ready(fwd1(x, w1, b1))
    ref1 = _reference_conv2d_block(x, w1, b1, stride=1, padding=1,
                                   norm="in", act="relu", pad_type="zero")
    assert out1.shape == (N, 32, H, W), out1.shape
    assert bool(jnp.all(jnp.isfinite(out1)))
    assert bool(jnp.allclose(out1, ref1, atol=5e-3, rtol=5e-3)), \
        float(jnp.max(jnp.abs(out1 - ref1)))

    # Config 2: 5x5, reflect pad 2, no norm, tanh (output-head-style Conv2dBlock)
    w2, b2 = conv_init(kw2, kb2, 16, Cin, 5)
    fwd2 = jax.jit(functools.partial(conv2d_block, stride=1, padding=2,
                                     norm="none", act="tanh", pad_type="reflect"))
    out2 = jax.block_until_ready(fwd2(x, w2, b2))
    ref2 = _reference_conv2d_block(x, w2, b2, stride=1, padding=2,
                                   norm="none", act="tanh", pad_type="reflect")
    assert out2.shape == (N, 16, H, W), out2.shape
    assert bool(jnp.all(jnp.isfinite(out2)))
    assert bool(jnp.allclose(out2, ref2, atol=5e-3, rtol=5e-3)), \
        float(jnp.max(jnp.abs(out2 - ref2)))

    print("KERNEL_OK")
</pallas_src>

<mosaic_0001>
module attributes {stable_mosaic.version = 11 : i64} {
  func.func @_conv2d_block_kernel(%arg0: i32, %arg1: memref<1x18x18x4xbf16, #tpu.memory_space<vmem>>, %arg2: memref<3x12x32xbf16, #tpu.memory_space<vmem>>, %arg3: memref<1x32xf32, #tpu.memory_space<vmem>>, %arg4: memref<1x32x256xf32, #tpu.memory_space<vmem>>) attributes {dimension_semantics = [#tpu.dimension_semantics<parallel>], iteration_bounds = array<i64: 2>, scalar_prefetch = 0 : i64, scratch_operands = 0 : i64, tpu.core_type = #tpu.core_type<tc>, window_params = [{transform_indices = @transform_0, window_bounds = array<i64: 1, 18, 18, 4>}, {pipeline_mode = #tpu.pipeline_mode<synchronous>, transform_indices = @transform_1, window_bounds = array<i64: 3, 12, 32>}, {pipeline_mode = #tpu.pipeline_mode<synchronous>, transform_indices = @transform_2, window_bounds = array<i64: 1, 32>}, {transform_indices = @transform_3, window_bounds = array<i64: 1, 32, 256>}]} {
    %c0 = arith.constant 0 : index
    %c0_0 = arith.constant 0 : index
    %c0_1 = arith.constant 0 : index
    %c0_2 = arith.constant 0 : index
    %0 = vector.load %arg1[%c0, %c0_0, %c0_1, %c0_2] : memref<1x18x18x4xbf16, #tpu.memory_space<vmem>>, vector<1x18x18x4xbf16>
    %1 = vector.shape_cast %0 : vector<1x18x18x4xbf16> to vector<18x18x4xbf16>
    %cst = arith.constant 0.000000e+00 : f32
    %2 = vector.broadcast %cst : f32 to vector<256x32xf32>
    %3 = vector.extract_strided_slice %1 {offsets = [0, 0, 0], sizes = [16, 18, 4], strides = [1, 1, 1]} : vector<18x18x4xbf16> to vector<16x18x4xbf16>
    %4 = vector.extract_strided_slice %3 {offsets = [0, 0, 0], sizes = [16, 16, 4], strides = [1, 1, 1]} : vector<16x18x4xbf16> to vector<16x16x4xbf16>
    %5 = vector.extract_strided_slice %3 {offsets = [0, 1, 0], sizes = [16, 16, 4], strides = [1, 1, 1]} : vector<16x18x4xbf16> to vector<16x16x4xbf16>
    %6 = vector.extract_strided_slice %3 {offsets = [0, 2, 0], sizes = [16, 16, 4], strides = [1, 1, 1]} : vector<16x18x4xbf16> to vector<16x16x4xbf16>
    %7 = tpu.concatenate %4, %5, %6 in 2 : vector<16x16x4xbf16>, vector<16x16x4xbf16>, vector<16x16x4xbf16> -> vector<16x16x12xbf16>
    %8 = vector.shape_cast %7 : vector<16x16x12xbf16> to vector<256x12xbf16>
    %c0_3 = arith.constant 0 : index
    %c0_4 = arith.constant 0 : index
    %c0_5 = arith.constant 0 : index
    %9 = vector.load %arg2[%c0_3, %c0_4, %c0_5] : memref<3x12x32xbf16, #tpu.memory_space<vmem>>, vector<1x12x32xbf16>
    %10 = vector.shape_cast %9 : vector<1x12x32xbf16> to vector<12x32xbf16>
    %cst_6 = arith.constant dense<0.000000e+00> : vector<256x32xf32>
    %11 = tpu.matmul %8, %10, %cst_6 {dimension_numbers = #tpu.dot_dimension_numbers<[1], [0], [0], [1], [0, 0, 1, 1], [], []>} : vector<256x12xbf16>, vector<12x32xbf16>, vector<256x32xf32> -> vector<256x32xf32>
    %12 = arith.addf %2, %11 : vector<256x32xf32>
    %13 = vector.extract_strided_slice %1 {offsets = [1, 0, 0], sizes = [16, 18, 4], strides = [1, 1, 1]} : vector<18x18x4xbf16> to vector<16x18x4xbf16>
    %14 = vector.extract_strided_slice %13 {offsets = [0, 0, 0], sizes = [16, 16, 4], strides = [1, 1, 1]} : vector<16x18x4xbf16> to vector<16x16x4xbf16>
    %15 = vector.extract_strided_slice %13 {offsets = [0, 1, 0], sizes = [16, 16, 4], strides = [1, 1, 1]} : vector<16x18x4xbf16> to vector<16x16x4xbf16>
    %16 = vector.extract_strided_slice %13 {offsets = [0, 2, 0], sizes = [16, 16, 4], strides = [1, 1, 1]} : vector<16x18x4xbf16> to vector<16x16x4xbf16>
    %17 = tpu.concatenate %14, %15, %16 in 2 : vector<16x16x4xbf16>, vector<16x16x4xbf16>, vector<16x16x4xbf16> -> vector<16x16x12xbf16>
    %18 = vector.shape_cast %17 : vector<16x16x12xbf16> to vector<256x12xbf16>
    %c1 = arith.constant 1 : index
    %c0_7 = arith.constant 0 : index
    %c0_8 = arith.constant 0 : index
    %19 = vector.load %arg2[%c1, %c0_7, %c0_8] : memref<3x12x32xbf16, #tpu.memory_space<vmem>>, vector<1x12x32xbf16>
    %20 = vector.shape_cast %19 : vector<1x12x32xbf16> to vector<12x32xbf16>
    %cst_9 = arith.constant dense<0.000000e+00> : vector<256x32xf32>
    %21 = tpu.matmul %18, %20, %cst_9 {dimension_numbers = #tpu.dot_dimension_numbers<[1], [0], [0], [1], [0, 0, 1, 1], [], []>} : vector<256x12xbf16>, vector<12x32xbf16>, vector<256x32xf32> -> vector<256x32xf32>
    %22 = arith.addf %12, %21 : vector<256x32xf32>
    %23 = vector.extract_strided_slice %1 {offsets = [2, 0, 0], sizes = [16, 18, 4], strides = [1, 1, 1]} : vector<18x18x4xbf16> to vector<16x18x4xbf16>
    %24 = vector.extract_strided_slice %23 {offsets = [0, 0, 0], sizes = [16, 16, 4], strides = [1, 1, 1]} : vector<16x18x4xbf16> to vector<16x16x4xbf16>
    %25 = vector.extract_strided_slice %23 {offsets = [0, 1, 0], sizes = [16, 16, 4], strides = [1, 1, 1]} : vector<16x18x4xbf16> to vector<16x16x4xbf16>
    %26 = vector.extract_strided_slice %23 {offsets = [0, 2, 0], sizes = [16, 16, 4], strides = [1, 1, 1]} : vector<16x18x4xbf16> to vector<16x16x4xbf16>
    %27 = tpu.concatenate %24, %25, %26 in 2 : vector<16x16x4xbf16>, vector<16x16x4xbf16>, vector<16x16x4xbf16> -> vector<16x16x12xbf16>
    %28 = vector.shape_cast %27 : vector<16x16x12xbf16> to vector<256x12xbf16>
    %c2 = arith.constant 2 : index
    %c0_10 = arith.constant 0 : index
    %c0_11 = arith.constant 0 : index
    %29 = vector.load %arg2[%c2, %c0_10, %c0_11] : memref<3x12x32xbf16, #tpu.memory_space<vmem>>, vector<1x12x32xbf16>
    %30 = vector.shape_cast %29 : vector<1x12x32xbf16> to vector<12x32xbf16>
    %cst_12 = arith.constant dense<0.000000e+00> : vector<256x32xf32>
    %31 = tpu.matmul %28, %30, %cst_12 {dimension_numbers = #tpu.dot_dimension_numbers<[1], [0], [0], [1], [0, 0, 1, 1], [], []>} : vector<256x12xbf16>, vector<12x32xbf16>, vector<256x32xf32> -> vector<256x32xf32>
    %32 = arith.addf %22, %31 : vector<256x32xf32>
    %c0_13 = arith.constant 0 : index
    %c0_14 = arith.constant 0 : index
    %33 = vector.load %arg3[%c0_13, %c0_14] : memref<1x32xf32, #tpu.memory_space<vmem>>, vector<1x32xf32>
    %34 = vector.broadcast %33 : vector<1x32xf32> to vector<256x32xf32>
    %35 = arith.addf %32, %34 : vector<256x32xf32>
    %cst_15 = arith.constant dense<0.000000e+00> : vector<32xf32>
    %36 = vector.multi_reduction <add>, %35, %cst_15 [0] : vector<256x32xf32> to vector<32xf32>
    %37 = vector.shape_cast %36 : vector<32xf32> to vector<1x32xf32>
    %38 = arith.mulf %35, %35 : vector<256x32xf32>
    %cst_16 = arith.constant dense<0.000000e+00> : vector<32xf32>
    %39 = vector.multi_reduction <add>, %38, %cst_16 [0] : vector<256x32xf32> to vector<32xf32>
    %40 = vector.shape_cast %39 : vector<32xf32> to vector<1x32xf32>
    %cst_17 = arith.constant 3.906250e-03 : f32
    %41 = vector.broadcast %cst_17 : f32 to vector<1x32xf32>
    %42 = arith.mulf %37, %41 : vector<1x32xf32>
    %cst_18 = arith.constant 3.906250e-03 : f32
    %43 = vector.broadcast %cst_18 : f32 to vector<1x32xf32>
    %44 = arith.mulf %40, %43 : vector<1x32xf32>
    %45 = arith.mulf %42, %42 : vector<1x32xf32>
    %46 = arith.subf %44, %45 : vector<1x32xf32>
    %cst_19 = arith.constant 0.000000e+00 : f32
    %47 = vector.broadcast %cst_19 : f32 to vector<1x32xf32>
    %48 = arith.maximumf %46, %47 : vector<1x32xf32>
    %49 = vector.broadcast %42 : vector<1x32xf32> to vector<256x32xf32>
    %50 = arith.subf %35, %49 : vector<256x32xf32>
    %cst_20 = arith.constant 9.99999974E-6 : f32
    %51 = vector.broadcast %cst_20 : f32 to vector<1x32xf32>
    %52 = arith.addf %48, %51 : vector<1x32xf32>
    %53 = math.rsqrt %52 : vector<1x32xf32>
    %54 = vector.broadcast %53 : vector<1x32xf32> to vector<256x32xf32>
    %55 = arith.mulf %50, %54 : vector<256x32xf32>
    %cst_21 = arith.constant 0.000000e+00 : f32
    %56 = vector.broadcast %cst_21 : f32 to vector<256x32xf32>
    %57 = arith.maximumf %55, %56 : vector<256x32xf32>
    %58 = tpu.transpose %57, [1, 0] : vector<256x32xf32> -> vector<32x256xf32>
    %c0_22 = arith.constant 0 : index
    %c0_23 = arith.constant 0 : index
    %c0_24 = arith.constant 0 : index
    %59 = vector.load %arg4[%c0_22, %c0_23, %c0_24] : memref<1x32x256xf32, #tpu.memory_space<vmem>>, vector<1x32x256xf32>
    %60 = vector.shape_cast %59 : vector<1x32x256xf32> to vector<32x256xf32>
    %61 = vector.shape_cast %58 : vector<32x256xf32> to vector<1x32x256xf32>
    tpu.vector_store %arg4[%c0_22, %c0_23, %c0_24], %61 {strides = array<i32>} : memref<1x32x256xf32, #tpu.memory_space<vmem>>, vector<1x32x256xf32>,
    return
  }
  func.func @transform_0(%arg0: i32) -> (i32, i32, i32, i32) {
    %c0_i32 = arith.constant 0 : i32
    %c0_i32_0 = arith.constant 0 : i32
    %c0_i32_1 = arith.constant 0 : i32
    %c0_i32_2 = arith.constant 0 : i32
    return %arg0, %c0_i32, %c0_i32_0, %c0_i32_1 : i32, i32, i32, i32
  }
  func.func @transform_1(%arg0: i32) -> (i32, i32, i32) {
    %c0_i32 = arith.constant 0 : i32
    %c0_i32_0 = arith.constant 0 : i32
    %c0_i32_1 = arith.constant 0 : i32
    %c0_i32_2 = arith.constant 0 : i32
    return %c0_i32, %c0_i32_0, %c0_i32_1 : i32, i32, i32
  }
  func.func @transform_2(%arg0: i32) -> (i32, i32) {
    %c0_i32 = arith.constant 0 : i32
    %c0_i32_0 = arith.constant 0 : i32
    %c0_i32_1 = arith.constant 0 : i32
    return %c0_i32, %c0_i32_0 : i32, i32
  }
  func.func @transform_3(%arg0: i32) -> (i32, i32, i32) {
    %c0_i32 = arith.constant 0 : i32
    %c0_i32_0 = arith.constant 0 : i32
    %c0_i32_1 = arith.constant 0 : i32
    return %arg0, %c0_i32, %c0_i32_0 : i32, i32, i32
  }
}

</mosaic_0001>

<llo_original>
// kernel: conv2d_block.1
$region0: #{conv2d_block.1}
  #allocation0 [shape = 'u32[]', space=smem, size = 0x4, offset = 0x4, fixed_abs, tag = 'smem constant byte address 0x4 - core index']
  #allocation1 [shape = 'u32[144,128]{1,0:T(1,128)}', space=vmem, size = 0x12000, scoped, tag = 'internal scratch']
  %s0 = inlined_call_operand.vmem [shape: bf16[2,18,18,4], index: 0, kind: input, shape index: {}]
  %s1 = inlined_call_operand.vmem [shape: bf16[3,12,32], index: 1, kind: input, shape index: {}]
  %s2 = inlined_call_operand.vmem [shape: f32[1,32], index: 2, kind: input, shape index: {}]
  %s3 = inlined_call_operand.vmem [shape: f32[2,32,256], index: 3, kind: output, shape index: {}]
  %s4 = sld [smem:[#allocation0]]
  $region45: #{conv2d_block.1} parent=0
    _
  %s6 = ssub.s32 1, %s4
  %s7 = scalar_select 0, %s6, %s4
  loop: start=0, step=1, limit=4
  $region2: #{conv2d_block.1} parent=0 // loop_pre_header
    _
  $region3: #{conv2d_block.1} parent=0 // loop_header
    %s9 = sphi 0, %s13
    %p10 = scmp.ge.s32.totalorder %s9, 4
    %s19 = sphi 0, %s21
    %s22 = sphi 0, %s19
    %s23 = sphi 0, %s22
    %s39 = sphi 0, %s23
    %s43 = sphi 0, %s43
    %s45 = sphi 0, %s43
    %s46 = sphi 0, %s45
    %s60 = sphi 0, %s46
    %s64 = sphi 0, %s64
    %s66 = sphi 0, %s64
    %s67 = sphi 0, %s66
    %s81 = sphi 0, %s67
    %s87 = sphi 0, %s89
    %s90 = sphi 0, %s87
    %s91 = sphi 0, %s90
    %s107 = sphi 0, %s91
  $region4: #{conv2d_block.1} parent=0 // loop_header_branch
    %12 = sbr.rel (%p10) target = $region8
  $region5: #{conv2d_block.1} parent=0 // loop_body
    %s14 = ssub.s32 %s9, 1
    %s15 = ssub.s32 %s9, 2
    %s16 = sadd.s32 %s9, 1
    %s17 = ssub.s32 %s9, %s16
    %p18 = scmp.eq.s32.totalorder %s17, 0
    %s20 = sadd.s32 %s19, 1
    %s21 = scalar_select %p18, %s19, %s20
    %p24 = pneg %p18
    %p25 = scmp.eq.s32.totalorder %s9, 1
    %p26 = por %p24, %p25
    %p27 = scmp.ne.s32.totalorder %s19, %s22
    %p28 = scmp.eq.s32.totalorder %s9, 0
    %p29 = por %p27, %p28
    %p30 = scmp.ne.s32.totalorder %s19, %s22
    %p31 = scmp.eq.s32.totalorder %s14, 1
    %p32 = por %p30, %p31
    %p33 = scmp.ne.s32.totalorder %s22, %s23
    %p34 = scmp.eq.s32.totalorder %s14, 0
    %p35 = por %p33, %p34
    %p36 = scmp.ne.s32.totalorder %s22, %s23
    %p37 = scmp.eq.s32.totalorder %s15, 1
    %p38 = por %p36, %p37
    %p40 = scmp.ne.s32.totalorder %s23, %s39
    %p41 = scmp.eq.s32.totalorder %s15, 0
    %p42 = por %p40, %p41
    %s44 = sadd.s32 %s43, 1
    %p47 = scmp.eq.s32.totalorder %s9, 1
    %p48 = scmp.ne.s32.totalorder %s43, %s45
    %p49 = scmp.eq.s32.totalorder %s9, 0
    %p50 = por %p48, %p49
    %p51 = scmp.ne.s32.totalorder %s43, %s45
    %p52 = scmp.eq.s32.totalorder %s14, 1
    %p53 = por %p51, %p52
    %p54 = scmp.ne.s32.totalorder %s45, %s46
    %p55 = scmp.eq.s32.totalorder %s14, 0
    %p56 = por %p54, %p55
    %p57 = scmp.ne.s32.totalorder %s45, %s46
    %p58 = scmp.eq.s32.totalorder %s15, 1
    %p59 = por %p57, %p58
    %p61 = scmp.ne.s32.totalorder %s46, %s60
    %p62 = scmp.eq.s32.totalorder %s15, 0
    %p63 = por %p61, %p62
    %s65 = sadd.s32 %s64, 1
    %p68 = scmp.eq.s32.totalorder %s9, 1
    %p69 = scmp.ne.s32.totalorder %s64, %s66
    %p70 = scmp.eq.s32.totalorder %s9, 0
    %p71 = por %p69, %p70
    %p72 = scmp.ne.s32.totalorder %s64, %s66
    %p73 = scmp.eq.s32.totalorder %s14, 1
    %p74 = por %p72, %p73
    %p75 = scmp.ne.s32.totalorder %s66, %s67
    %p76 = scmp.eq.s32.totalorder %s14, 0
    %p77 = por %p75, %p76
    %p78 = scmp.ne.s32.totalorder %s66, %s67
    %p79 = scmp.eq.s32.totalorder %s15, 1
    %p80 = por %p78, %p79
    %p82 = scmp.ne.s32.totalorder %s67, %s81
    %p83 = scmp.eq.s32.totalorder %s15, 0
    %p84 = por %p82, %p83
    %s85 = ssub.s32 %s9, %s16
    %p86 = scmp.eq.s32.totalorder %s85, 0
    %s88 = sadd.s32 %s87, 1
    %s89 = scalar_select %p86, %s87, %s88
    %p92 = pneg %p86
    %p93 = scmp.eq.s32.totalorder %s9, 1
    %p94 = por %p92, %p93
    %p95 = scmp.ne.s32.totalorder %s87, %s90
    %p96 = scmp.eq.s32.totalorder %s9, 0
    %p97 = por %p95, %p96
    %p98 = scmp.ne.s32.totalorder %s87, %s90
    %p99 = scmp.eq.s32.totalorder %s14, 1
    %p100 = por %p98, %p99
    %p101 = scmp.ne.s32.totalorder %s90, %s91
    %p102 = scmp.eq.s32.totalorder %s14, 0
    %p103 = por %p101, %p102
    %p104 = scmp.ne.s32.totalorder %s90, %s91
    %p105 = scmp.eq.s32.totalorder %s15, 1
    %p106 = por %p104, %p105
    %p108 = scmp.ne.s32.totalorder %s91, %s107
    %p109 = scmp.eq.s32.totalorder %s15, 0
    %p110 = por %p108, %p109
    %p111 = scmp.le.s32.totalorder 1, %s9
    %p112 = scmp.lt.s32.totalorder %s9, 3
    %p113 = pnand %p111, %p112
    %p114 = pneg %p113
    // Predicated region
    $region9: #{conv2d_block.1} parent=5 // pred_check
      _
    $region10: #{conv2d_block.1} parent=5 // pred_check_branch
      %116 = sbr.rel (%p113) target = $region12
    $region11: #{conv2d_block.1} parent=5 // pred_region
      %s117 = ssub.s32 %s9, 1
      // Predicated region
      $region13: #{conv2d_block.1} parent=11 // pred_check
        %p118 = pneg %p56
      $region14: #{conv2d_block.1} parent=11 // pred_check_branch
        %120 = sbr.rel (%p118) target = $region16
      $region15: #{conv2d_block.1} parent=11 // pred_region
        _
      $region16: #{conv2d_block.1} parent=11 // pred_fallthru
        _
      // Predicated region
      $region17: #{conv2d_block.1} parent=11 // pred_check
        %p121 = pneg %p77
      $region18: #{conv2d_block.1} parent=11 // pred_check_branch
        %123 = sbr.rel (%p121) target = $region20
      $region19: #{conv2d_block.1} parent=11 // pred_region
        _
      $region20: #{conv2d_block.1} parent=11 // pred_fallthru
        _
    $region12: #{conv2d_block.1} parent=5 // pred_fallthru
      _
    %p124 = scmp.lt.s32.totalorder %s9, 2
    // Predicated region
    $region21: #{conv2d_block.1} parent=5 // pred_check
      %p125 = pneg %p124
    $region22: #{conv2d_block.1} parent=5 // pred_check_branch
      %127 = sbr.rel (%p125) target = $region24
    $region23: #{conv2d_block.1} parent=5 // pred_region
      // Predicated region
      $region25: #{conv2d_block.1} parent=23 // pred_check
        %p128 = pneg %p29
      $region26: #{conv2d_block.1} parent=23 // pred_check_branch
        %130 = sbr.rel (%p128) target = $region28
      $region27: #{conv2d_block.1} parent=23 // pred_region
        %p131 = scmp.lt.s32.totalorder %s9, 1
        %s132 = scalar_select %p131, %s9, 1
        %s133 = smul.addr %s132, 54
        %s134 = smul.addr %s133, 4
        %s135 = scalar_lea.vmem %s0, %s134
      $region28: #{conv2d_block.1} parent=23 // pred_fallthru
        _
    $region24: #{conv2d_block.1} parent=5 // pred_fallthru
      _
    %p136 = scmp.le.s32.totalorder 1, %s9
    %p137 = scmp.lt.s32.totalorder %s9, 3
    %p138 = pnand %p136, %p137
    %p139 = pneg %p138
    // Predicated region
    $region29: #{conv2d_block.1} parent=5 // pred_check
      _
    $region30: #{conv2d_block.1} parent=5 // pred_check_branch
      %141 = sbr.rel (%p138) target = $region32
    $region31: #{conv2d_block.1} parent=5 // pred_region
      %s142 = ssub.s32 %s9, 1
      %p143 = scmp.lt.s32.totalorder %s14, 1
      %s144 = scalar_select %p143, %s14, 1
      %s145 = smul.addr %s144, 54
      %s146 = smul.addr %s145, 4
      %s147 = scalar_lea.vmem %s0, %s146
      %p148 = pneg %p35
      %p149 = pneg %p32
      %p150 = pneg %p56
      %p151 = pneg %p53
      %p152 = pneg %p77
      %p153 = pneg %p74
      %p154 = pneg %p103
      %p155 = pneg %p100
      %p156 = scmp.lt.s32.totalorder %s14, 1
      %s157 = scalar_select %p156, %s14, 1
      %s158 = smul.addr %s157, 8
      %s159 = smul.addr %s158, 8
      %s160 = scalar_lea.vmem %s3, %s159
      %p161 = scmp.lt.s32.totalorder %s14, 1
      %s162 = scalar_select %p161, %s14, 1
      %s163 = smul.addr %s162, 54
      %s164 = smul.addr %s163, 4
      %s165 = scalar_lea.vmem %s0, %s164
      %p166 = scmp.lt.s32.totalorder %s14, 1
      %s167 = scalar_select %p166, %s14, 1
      %s168 = smul.addr %s167, 8
      %s169 = smul.addr %s168, 8
      %s170 = scalar_lea.vmem %s3, %s169
      %v172 = vld [vmem:[%s165] sm:$0xf]
      %v173 = vld [vmem:[%s165 + $0x4] sm:$0xf]
      %v174 = vld [vmem:[%s165 + $0x8] sm:$0x1]
      %v175 = vld [vmem:[%s165 + $0xc] sm:$0xf]
      %v176 = vld [vmem:[%s165 + $0x10] sm:$0xf]
      %v177 = vld [vmem:[%s165 + $0x14] sm:$0x1]
      %v178 = vld [vmem:[%s165 + $0x18] sm:$0xf]
      %v179 = vld [vmem:[%s165 + $0x1c] sm:$0xf]
      %v180 = vld [vmem:[%s165 + $0x20] sm:$0x1]
      %v181 = vld [vmem:[%s165 + $0x24] sm:$0xf]
      %v182 = vld [vmem:[%s165 + $0x28] sm:$0xf]
      %v183 = vld [vmem:[%s165 + $0x2c] sm:$0x1]
      %v184 = vld [vmem:[%s165 + $0x30] sm:$0xf]
      %v185 = vld [vmem:[%s165 + $0x34] sm:$0xf]
      %v186 = vld [vmem:[%s165 + $0x38] sm:$0x1]
      %v187 = vld [vmem:[%s165 + $0x3c] sm:$0xf]
      %v188 = vld [vmem:[%s165 + $0x40] sm:$0xf]
      %v189 = vld [vmem:[%s165 + $0x44] sm:$0x1]
      %v190 = vld [vmem:[%s165 + $0x48] sm:$0xf]
      %v191 = vld [vmem:[%s165 + $0x4c] sm:$0xf]
      %v192 = vld [vmem:[%s165 + $0x50] sm:$0x1]
      %v193 = vld [vmem:[%s165 + $0x54] sm:$0xf]
      %v194 = vld [vmem:[%s165 + $0x58] sm:$0xf]
      %v195 = vld [vmem:[%s165 + $0x5c] sm:$0x1]
      %v196 = vld [vmem:[%s165 + $0x60] sm:$0xf]
      %v197 = vld [vmem:[%s165 + $0x64] sm:$0xf]
      %v198 = vld [vmem:[%s165 + $0x68] sm:$0x1]
      %v199 = vld [vmem:[%s165 + $0x6c] sm:$0xf]
      %v200 = vld [vmem:[%s165 + $0x70] sm:$0xf]
      %v201 = vld [vmem:[%s165 + $0x74] sm:$0x1]
      %v202 = vld [vmem:[%s165 + $0x78] sm:$0xf]
      %v203 = vld [vmem:[%s165 + $0x7c] sm:$0xf]
      %v204 = vld [vmem:[%s165 + $0x80] sm:$0x1]
      %v205 = vld [vmem:[%s165 + $0x84] sm:$0xf]
      %v206 = vld [vmem:[%s165 + $0x88] sm:$0xf]
      %v207 = vld [vmem:[%s165 + $0x8c] sm:$0x1]
      %v208 = vld [vmem:[%s165 + $0x90] sm:$0xf]
      %v209 = vld [vmem:[%s165 + $0x94] sm:$0xf]
      %v210 = vld [vmem:[%s165 + $0x98] sm:$0x1]
      %v211 = vld [vmem:[%s165 + $0x9c] sm:$0xf]
      %v212 = vld [vmem:[%s165 + $0xa0] sm:$0xf]
      %v213 = vld [vmem:[%s165 + $0xa4] sm:$0x1]
      %v214 = vld [vmem:[%s165 + $0xa8] sm:$0xf]
      %v215 = vld [vmem:[%s165 + $0xac] sm:$0xf]
      %v216 = vld [vmem:[%s165 + $0xb0] sm:$0x1]
      %v217 = vld [vmem:[%s165 + $0xb4] sm:$0xf]
      %v218 = vld [vmem:[%s165 + $0xb8] sm:$0xf]
      %v219 = vld [vmem:[%s165 + $0xbc] sm:$0x1]
      %v220 = vld [vmem:[%s165 + $0xc0] sm:$0xf]
      %v221 = vld [vmem:[%s165 + $0xc4] sm:$0xf]
      %v222 = vld [vmem:[%s165 + $0xc8] sm:$0x1]
      %v223 = vld [vmem:[%s165 + $0xcc] sm:$0xf]
      %v224 = vld [vmem:[%s165 + $0xd0] sm:$0xf]
      %v225 = vld [vmem:[%s165 + $0xd4] sm:$0x1]
      %v258 = vunpack.c.l.b16 %v172
      %v259 = vunpack.c.l.b16 %v173
      %v260 = vunpack.c.l.b16 %v175
      %v261 = vunpack.c.l.b16 %v176
      %v262 = vunpack.c.l.b16 %v178
      %v263 = vunpack.c.l.b16 %v179
      %v264 = vunpack.c.l.b16 %v181
      %v265 = vunpack.c.l.b16 %v182
      %v266 = vunpack.c.l.b16 %v184
      %v267 = vunpack.c.l.b16 %v185
      %v268 = vunpack.c.l.b16 %v187
      %v269 = vunpack.c.l.b16 %v188
      %v270 = vunpack.c.l.b16 %v190
      %v271 = vunpack.c.l.b16 %v191
      %v272 = vunpack.c.l.b16 %v193
      %v273 = vunpack.c.l.b16 %v194
      %v274 = vunpack.c.l.b16 %v196
      %v275 = vunpack.c.l.b16 %v197
      %v276 = vunpack.c.l.b16 %v199
      %v277 = vunpack.c.l.b16 %v200
      %v278 = vunpack.c.l.b16 %v202
      %v279 = vunpack.c.l.b16 %v203
      %v280 = vunpack.c.l.b16 %v205
      %v281 = vunpack.c.l.b16 %v206
      %v282 = vunpack.c.l.b16 %v208
      %v283 = vunpack.c.l.b16 %v209
      %v284 = vunpack.c.l.b16 %v211
      %v285 = vunpack.c.l.b16 %v212
      %v286 = vunpack.c.l.b16 %v214
      %v287 = vunpack.c.l.b16 %v215
      %v288 = vunpack.c.l.b16 %v217
      %v289 = vunpack.c.l.b16 %v218
      %v290 = vpack.c.b16 %v259, %v258
      %v291 = vpack.c.b16 %v261, %v260
      %v292 = vpack.c.b16 %v263, %v262
      %v293 = vpack.c.b16 %v265, %v264
      %v294 = vpack.c.b16 %v267, %v266
      %v295 = vpack.c.b16 %v269, %v268
      %v296 = vpack.c.b16 %v271, %v270
      %v297 = vpack.c.b16 %v273, %v272
      %v298 = vpack.c.b16 %v275, %v274
      %v299 = vpack.c.b16 %v277, %v276
      %v300 = vpack.c.b16 %v279, %v278
      %v301 = vpack.c.b16 %v281, %v280
      %v302 = vpack.c.b16 %v283, %v282
      %v303 = vpack.c.b16 %v285, %v284
      %v304 = vpack.c.b16 %v287, %v286
      %v305 = vpack.c.b16 %v289, %v288
      %v322 = vunpack.c.l.b16 %v174
      %v323 = vunpack.c.l.b16 %v177
      %v324 = vunpack.c.l.b16 %v180
      %v325 = vunpack.c.l.b16 %v183
      %v326 = vunpack.c.l.b16 %v186
      %v327 = vunpack.c.l.b16 %v189
      %v328 = vunpack.c.l.b16 %v192
      %v329 = vunpack.c.l.b16 %v195
      %v330 = vunpack.c.l.b16 %v198
      %v331 = vunpack.c.l.b16 %v201
      %v332 = vunpack.c.l.b16 %v204
      %v333 = vunpack.c.l.b16 %v207
      %v334 = vunpack.c.l.b16 %v210
      %v335 = vunpack.c.l.b16 %v213
      %v336 = vunpack.c.l.b16 %v216
      %v337 = vunpack.c.l.b16 %v219
      %v338 = vpack.c.b16 %v322, %v322
      %v339 = vpack.c.b16 %v323, %v323
      %v340 = vpack.c.b16 %v324, %v324
      %v341 = vpack.c.b16 %v325, %v325
      %v342 = vpack.c.b16 %v326, %v326
      %v343 = vpack.c.b16 %v327, %v327
      %v344 = vpack.c.b16 %v328, %v328
      %v345 = vpack.c.b16 %v329, %v329
      %v346 = vpack.c.b16 %v330, %v330
      %v347 = vpack.c.b16 %v331, %v331
      %v348 = vpack.c.b16 %v332, %v332
      %v349 = vpack.c.b16 %v333, %v333
      %v350 = vpack.c.b16 %v334, %v334
      %v351 = vpack.c.b16 %v335, %v335
      %v352 = vpack.c.b16 %v336, %v336
      %v353 = vpack.c.b16 %v337, %v337
      %vm354 = vsmask.f32 7424
      %v356 = vshrl.u32 %v290, 16
      %v358 = vshll.u32 %v290, 16
      %v360 = vrot.slane %v358, 1
      %v361 = vor.u32 %v356, %v360
      %v363 = vshll.u32 %v338, 16
      %v365 = vrot.slane %v363, 1
      %v366 = vsel %vm354, %v361, %v365
      %v368 = vshrl.u32 %v291, 16
      %v370 = vshll.u32 %v291, 16
      %v372 = vrot.slane %v370, 1
      %v373 = vor.u32 %v368, %v372
      %v375 = vshll.u32 %v339, 16
      %v377 = vrot.slane %v375, 1
      %v378 = vsel %vm354, %v373, %v377
      %v380 = vshrl.u32 %v292, 16
      %v382 = vshll.u32 %v292, 16
      %v384 = vrot.slane %v382, 1
      %v385 = vor.u32 %v380, %v384
      %v387 = vshll.u32 %v340, 16
      %v389 = vrot.slane %v387, 1
      %v390 = vsel %vm354, %v385, %v389
      %v392 = vshrl.u32 %v293, 16
      %v394 = vshll.u32 %v293, 16
      %v396 = vrot.slane %v394, 1
      %v397 = vor.u32 %v392, %v396
      %v399 = vshll.u32 %v341, 16
      %v401 = vrot.slane %v399, 1
      %v402 = vsel %vm354, %v397, %v401
      %v404 = vshrl.u32 %v294, 16
      %v406 = vshll.u32 %v294, 16
      %v408 = vrot.slane %v406, 1
      %v409 = vor.u32 %v404, %v408
      %v411 = vshll.u32 %v342, 16
      %v413 = vrot.slane %v411, 1
      %v414 = vsel %vm354, %v409, %v413
      %v416 = vshrl.u32 %v295, 16
      %v418 = vshll.u32 %v295, 16
      %v420 = vrot.slane %v418, 1
      %v421 = vor.u32 %v416, %v420
      %v423 = vshll.u32 %v343, 16
      %v425 = vrot.slane %v423, 1
      %v426 = vsel %vm354, %v421, %v425
      %v428 = vshrl.u32 %v296, 16
      %v430 = vshll.u32 %v296, 16
      %v432 = vrot.slane %v430, 1
      %v433 = vor.u32 %v428, %v432
      %v435 = vshll.u32 %v344, 16
      %v437 = vrot.slane %v435, 1
      %v438 = vsel %vm354, %v433, %v437
      %v440 = vshrl.u32 %v297, 16
      %v442 = vshll.u32 %v297, 16
      %v444 = vrot.slane %v442, 1
      %v445 = vor.u32 %v440, %v444
      %v447 = vshll.u32 %v345, 16
      %v449 = vrot.slane %v447, 1
      %v450 = vsel %vm354, %v445, %v449
      %v452 = vshrl.u32 %v298, 16
      %v454 = vshll.u32 %v298, 16
      %v456 = vrot.slane %v454, 1
      %v457 = vor.u32 %v452, %v456
      %v459 = vshll.u32 %v346, 16
      %v461 = vrot.slane %v459, 1
      %v462 = vsel %vm354, %v457, %v461
      %v464 = vshrl.u32 %v299, 16
      %v466 = vshll.u32 %v299, 16
      %v468 = vrot.slane %v466, 1
      %v469 = vor.u32 %v464, %v468
      %v471 = vshll.u32 %v347, 16
      %v473 = vrot.slane %v471, 1
      %v474 = vsel %vm354, %v469, %v473
      %v476 = vshrl.u32 %v300, 16
      %v478 = vshll.u32 %v300, 16
      %v480 = vrot.slane %v478, 1
      %v481 = vor.u32 %v476, %v480
      %v483 = vshll.u32 %v348, 16
      %v485 = vrot.slane %v483, 1
      %v486 = vsel %vm354, %v481, %v485
      %v488 = vshrl.u32 %v301, 16
      %v490 = vshll.u32 %v301, 16
      %v492 = vrot.slane %v490, 1
      %v493 = vor.u32 %v488, %v492
      %v495 = vshll.u32 %v349, 16
      %v497 = vrot.slane %v495, 1
      %v498 = vsel %vm354, %v493, %v497
      %v500 = vshrl.u32 %v302, 16
      %v502 = vshll.u32 %v302, 16
      %v504 = vrot.slane %v502, 1
      %v505 = vor.u32 %v500, %v504
      %v507 = vshll.u32 %v350, 16
      %v509 = vrot.slane %v507, 1
      %v510 = vsel %vm354, %v505, %v509
      %v512 = vshrl.u32 %v303, 16
      %v514 = vshll.u32 %v303, 16
      %v516 = vrot.slane %v514, 1
      %v517 = vor.u32 %v512, %v516
      %v519 = vshll.u32 %v351, 16
      %v521 = vrot.slane %v519, 1
      %v522 = vsel %vm354, %v517, %v521
      %v524 = vshrl.u32 %v304, 16
      %v526 = vshll.u32 %v304, 16
      %v528 = vrot.slane %v526, 1
      %v529 = vor.u32 %v524, %v528
      %v531 = vshll.u32 %v352, 16
      %v533 = vrot.slane %v531, 1
      %v534 = vsel %vm354, %v529, %v533
      %v536 = vshrl.u32 %v305, 16
      %v538 = vshll.u32 %v305, 16
      %v540 = vrot.slane %v538, 1
      %v541 = vor.u32 %v536, %v540
      %v543 = vshll.u32 %v353, 16
      %v545 = vrot.slane %v543, 1
      %v546 = vsel %vm354, %v541, %v545
      %547 = vrot.lane.b32.xlu0 %v366, 4
      %v548 = vpop.permute.xlu0 %547
      %549 = vrot.lane.b32.xlu0 %v378, 4
      %v550 = vpop.permute.xlu0 %549
      %551 = vrot.lane.b32.xlu0 %v390, 4
      %v552 = vpop.permute.xlu0 %551
      %553 = vrot.lane.b32.xlu0 %v402, 4
      %v554 = vpop.permute.xlu0 %553
      %555 = vrot.lane.b32.xlu0 %v414, 4
      %v556 = vpop.permute.xlu0 %555
      %557 = vrot.lane.b32.xlu0 %v426, 4
      %v558 = vpop.permute.xlu0 %557
      %559 = vrot.lane.b32.xlu0 %v438, 4
      %v560 = vpop.permute.xlu0 %559
      %561 = vrot.lane.b32.xlu0 %v450, 4
      %v562 = vpop.permute.xlu0 %561
      %563 = vrot.lane.b32.xlu0 %v462, 4
      %v564 = vpop.permute.xlu0 %563
      %565 = vrot.lane.b32.xlu0 %v474, 4
      %v566 = vpop.permute.xlu0 %565
      %567 = vrot.lane.b32.xlu0 %v486, 4
      %v568 = vpop.permute.xlu0 %567
      %569 = vrot.lane.b32.xlu0 %v498, 4
      %v570 = vpop.permute.xlu0 %569
      %571 = vrot.lane.b32.xlu0 %v510, 4
      %v572 = vpop.permute.xlu0 %571
      %573 = vrot.lane.b32.xlu0 %v522, 4
      %v574 = vpop.permute.xlu0 %573
      %575 = vrot.lane.b32.xlu0 %v534, 4
      %v576 = vpop.permute.xlu0 %575
      %577 = vrot.lane.b32.xlu0 %v546, 4
      %v578 = vpop.permute.xlu0 %577
      %vm579 = vcmask 1046528
      %v580 = vrot.slane %v290, 1
      %v581 = vrot.slane %v338, 1
      %v582 = vsel %vm579, %v580, %v581
      %v583 = vrot.slane %v291, 1
      %v584 = vrot.slane %v339, 1
      %v585 = vsel %vm579, %v583, %v584
      %v586 = vrot.slane %v292, 1
      %v587 = vrot.slane %v340, 1
      %v588 = vsel %vm579, %v586, %v587
      %v589 = vrot.slane %v293, 1
      %v590 = vrot.slane %v341, 1
      %v591 = vsel %vm579, %v589, %v590
      %v592 = vrot.slane %v294, 1
      %v593 = vrot.slane %v342, 1
      %v594 = vsel %vm579, %v592, %v593
      %v595 = vrot.slane %v295, 1
      %v596 = vrot.slane %v343, 1
      %v597 = vsel %vm579, %v595, %v596
      %v598 = vrot.slane %v296, 1
      %v599 = vrot.slane %v344, 1
      %v600 = vsel %vm579, %v598, %v599
      %v601 = vrot.slane %v297, 1
      %v602 = vrot.slane %v345, 1
      %v603 = vsel %vm579, %v601, %v602
      %v604 = vrot.slane %v298, 1
      %v605 = vrot.slane %v346, 1
      %v606 = vsel %vm579, %v604, %v605
      %v607 = vrot.slane %v299, 1
      %v608 = vrot.slane %v347, 1
      %v609 = vsel %vm579, %v607, %v608
      %v610 = vrot.slane %v300, 1
      %v611 = vrot.slane %v348, 1
      %v612 = vsel %vm579, %v610, %v611
      %v613 = vrot.slane %v301, 1
      %v614 = vrot.slane %v349, 1
      %v615 = vsel %vm579, %v613, %v614
      %v616 = vrot.slane %v302, 1
      %v617 = vrot.slane %v350, 1
      %v618 = vsel %vm579, %v616, %v617
      %v619 = vrot.slane %v303, 1
      %v620 = vrot.slane %v351, 1
      %v621 = vsel %vm579, %v619, %v620
      %v622 = vrot.slane %v304, 1
      %v623 = vrot.slane %v352, 1
      %v624 = vsel %vm579, %v622, %v623
      %v625 = vrot.slane %v305, 1
      %v626 = vrot.slane %v353, 1
      %v627 = vsel %vm579, %v625, %v626
      %628 = vrot.lane.b32.xlu0 %v582, 8
      %v629 = vpop.permute.xlu0 %628
      %630 = vrot.lane.b32.xlu0 %v585, 8
      %v631 = vpop.permute.xlu0 %630
      %632 = vrot.lane.b32.xlu0 %v588, 8
      %v633 = vpop.permute.xlu0 %632
      %634 = vrot.lane.b32.xlu0 %v591, 8
      %v635 = vpop.permute.xlu0 %634
      %636 = vrot.lane.b32.xlu0 %v594, 8
      %v637 = vpop.permute.xlu0 %636
      %638 = vrot.lane.b32.xlu0 %v597, 8
      %v639 = vpop.permute.xlu0 %638
      %640 = vrot.lane.b32.xlu0 %v600, 8
      %v641 = vpop.permute.xlu0 %640
      %642 = vrot.lane.b32.xlu0 %v603, 8
      %v643 = vpop.permute.xlu0 %642
      %644 = vrot.lane.b32.xlu0 %v606, 8
      %v645 = vpop.permute.xlu0 %644
      %646 = vrot.lane.b32.xlu0 %v609, 8
      %v647 = vpop.permute.xlu0 %646
      %648 = vrot.lane.b32.xlu0 %v612, 8
      %v649 = vpop.permute.xlu0 %648
      %650 = vrot.lane.b32.xlu0 %v615, 8
      %v651 = vpop.permute.xlu0 %650
      %652 = vrot.lane.b32.xlu0 %v618, 8
      %v653 = vpop.permute.xlu0 %652
      %654 = vrot.lane.b32.xlu0 %v621, 8
      %v655 = vpop.permute.xlu0 %654
      %656 = vrot.lane.b32.xlu0 %v624, 8
      %v657 = vpop.permute.xlu0 %656
      %658 = vrot.lane.b32.xlu0 %v627, 8
      %v659 = vpop.permute.xlu0 %658
      %vm660 = vcmask 31744
      %v662 = vsel %vm660, %v290, %v548
      %v664 = vsel %vm660, %v291, %v550
      %v666 = vsel %vm660, %v292, %v552
      %v668 = vsel %vm660, %v293, %v554
      %v670 = vsel %vm660, %v294, %v556
      %v672 = vsel %vm660, %v295, %v558
      %v674 = vsel %vm660, %v296, %v560
      %v676 = vsel %vm660, %v297, %v562
      %v678 = vsel %vm660, %v298, %v564
      %v680 = vsel %vm660, %v299, %v566
      %v682 = vsel %vm660, %v300, %v568
      %v684 = vsel %vm660, %v301, %v570
      %v686 = vsel %vm660, %v302, %v572
      %v688 = vsel %vm660, %v303, %v574
      %v690 = vsel %vm660, %v304, %v576
      %v692 = vsel %vm660, %v305, %v578
      %vm693 = vcmask 64512
      %v695 = vsel %vm693, %v662, %v629
      %v697 = vsel %vm693, %v664, %v631
      %v699 = vsel %vm693, %v666, %v633
      %v701 = vsel %vm693, %v668, %v635
      %v703 = vsel %vm693, %v670, %v637
      %v705 = vsel %vm693, %v672, %v639
      %v707 = vsel %vm693, %v674, %v641
      %v709 = vsel %vm693, %v676, %v643
      %v711 = vsel %vm693, %v678, %v645
      %v713 = vsel %vm693, %v680, %v647
      %v715 = vsel %vm693, %v682, %v649
      %v717 = vsel %vm693, %v684, %v651
      %v719 = vsel %vm693, %v686, %v653
      %v721 = vsel %vm693, %v688, %v655
      %v723 = vsel %vm693, %v690, %v657
      %v725 = vsel %vm693, %v692, %v659
      %v726 = vld [vmem:[%s1] sm:$0xf]
      %v727 = vld [vmem:[%s1 + $0x4] sm:$0x3]
      %v730 = vunpack.c.l.b16 %v220
      %v731 = vunpack.c.l.b16 %v221
      %v732 = vpack.c.b16 %v731, %v730
      %v734 = vunpack.c.l.b16 %v222
      %v735 = vpack.c.b16 %v734, %v734
      %v737 = vshrl.u32 %v732, 16
      %v739 = vshll.u32 %v732, 16
      %v741 = vrot.slane %v739, 1
      %v742 = vor.u32 %v737, %v741
      %v744 = vshll.u32 %v735, 16
      %v746 = vrot.slane %v744, 1
      %v747 = vsel %vm354, %v742, %v746
      %748 = vrot.lane.b32.xlu0 %v747, 4
      %v749 = vpop.permute.xlu0 %748
      %v750 = vrot.slane %v732, 1
      %v751 = vrot.slane %v735, 1
      %v752 = vsel %vm579, %v750, %v751
      %753 = vrot.lane.b32.xlu0 %v752, 8
      %v754 = vpop.permute.xlu0 %753
      %v756 = vsel %vm660, %v732, %v749
      %v758 = vsel %vm693, %v756, %v754
      %s759 = scalar_lea.vmem %s1, 8
      %v760 = vld [vmem:[%s759] sm:$0xf]
      %v761 = vld [vmem:[%s759 + $0x4] sm:$0x3]
      %v764 = vunpack.c.l.b16 %v760
      %v765 = vunpack.c.l.b16 %v761
      %v766 = vpack.c.b16 %v765, %v764
      %vm767 = vcmask 97280
      %v768 = vsel %vm767, %v697, 0
      %v770 = vsel %vm767, %v699, 0
      %v772 = vsel %vm767, %v701, 0
      %v774 = vsel %vm767, %v703, 0
      %v776 = vsel %vm767, %v705, 0
      %v778 = vsel %vm767, %v707, 0
      %v780 = vsel %vm767, %v709, 0
      %v782 = vsel %vm767, %v711, 0
      %v784 = vsel %vm767, %v713, 0
      %v786 = vsel %vm767, %v715, 0
      %v788 = vsel %vm767, %v717, 0
      %v790 = vsel %vm767, %v719, 0
      %v792 = vsel %vm767, %v721, 0
      %v794 = vsel %vm767, %v723, 0
      %v796 = vsel %vm767, %v725, 0
      %v798 = vsel %vm767, %v758, 0
      %vm800 = vcmask 1045504
      %v802 = vsel %vm800, %v766, 0
      %804 = vmatprep.subr.bf16.mxu0 0
      %805 = vmatpush1.bf16.msra.mxu0 %v802
      %806 = vmatprep.subr.bf16.mxu0 0
      %807 = vmatpush1.bf16.msra.mxu0 0
      %808 = vmatprep.subr.bf16.mxu0 0
      %809 = vmatpush1.bf16.msra.mxu0 0
      %810 = vmatprep.subr.bf16.mxu0 0
      %811 = vmatpush1.bf16.msra.mxu0 0
      %812 = vmatprep.subr.bf16.mxu0 0
      %813 = vmatpush1.bf16.msra.mxu0 0
      %814 = vmatprep.subr.bf16.mxu0 0
      %815 = vmatpush1.bf16.msra.mxu0 0
      %816 = vmatprep.subr.bf16.mxu0 0
      %817 = vmatpush1.bf16.msra.mxu0 0
      %818 = vmatprep.subr.bf16.mxu0 0
      %819 = vmatpush1.bf16.msra.mxu0 0
      %820 = vmatprep.subr.bf16.mxu0 0
      %821 = vmatpush1.bf16.msra.mxu0 0
      %822 = vmatprep.subr.bf16.mxu0 0
      %823 = vmatpush1.bf16.msra.mxu0 0
      %824 = vmatprep.subr.bf16.mxu0 0
      %825 = vmatpush1.bf16.msra.mxu0 0
      %826 = vmatprep.subr.bf16.mxu0 0
      %827 = vmatpush1.bf16.msra.mxu0 0
      %828 = vmatprep.subr.bf16.mxu0 0
      %829 = vmatpush1.bf16.msra.mxu0 0
      %830 = vmatprep.subr.bf16.mxu0 0
      %831 = vmatpush1.bf16.msra.mxu0 0
      %832 = vmatprep.subr.bf16.mxu0 0
      %833 = vmatpush1.bf16.msra.mxu0 0
      %834 = vmatprep.subr.bf16.mxu0 0
      %835 = vmatpush1.bf16.msra.mxu0 0
      %836 = vmatprep.mubr.bf16.mxu0 0
      %837 = vmatmul.mubr.bf16.gmra.mrb[0].mxu0 %v768
      %v838 = vpop.f32.mrb[0].mxu0
      %v839 = vadd.f32 0.0, %v838
      %v840 = vpop.f32.mrb[0].mxu0
      %v841 = vpop.f32.mrb[0].mxu0
      %v842 = vadd.f32 0.0, %v841
      %v843 = vpop.f32.mrb[0].mxu0
      %844 = vmatprep.mubr.bf16.mxu0 0
      %845 = vmatmul.mubr.bf16.gmra.mrb[0].mxu0 %v770
      %v846 = vpop.f32.mrb[0].mxu0
      %v847 = vadd.f32 0.0, %v846
      %v848 = vpop.f32.mrb[0].mxu0
      %v849 = vpop.f32.mrb[0].mxu0
      %v850 = vadd.f32 0.0, %v849
      %v851 = vpop.f32.mrb[0].mxu0
      %852 = vmatprep.mubr.bf16.mxu0 0
      %853 = vmatmul.mubr.bf16.gmra.mrb[0].mxu0 %v772
      %v854 = vpop.f32.mrb[0].mxu0
      %v855 = vadd.f32 0.0, %v854
      %v856 = vpop.f32.mrb[0].mxu0
      %v857 = vpop.f32.mrb[0].mxu0
      %v858 = vadd.f32 0.0, %v857
      %v859 = vpop.f32.mrb[0].mxu0
      %860 = vmatprep.mubr.bf16.mxu0 0
      %861 = vmatmul.mubr.bf16.gmra.mrb[0].mxu0 %v774
      %v862 = vpop.f32.mrb[0].mxu0
      %v863 = vadd.f32 0.0, %v862
      %v864 = vpop.f32.mrb[0].mxu0
      %v865 = vpop.f32.mrb[0].mxu0
      %v866 = vadd.f32 0.0, %v865
      %v867 = vpop.f32.mrb[0].mxu0
      %868 = vmatprep.mubr.bf16.mxu0 0
      %869 = vmatmul.mubr.bf16.gmra.mrb[0].mxu0 %v776
      %v870 = vpop.f32.mrb[0].mxu0
      %v871 = vadd.f32 0.0, %v870
      %v872 = vpop.f32.mrb[0].mxu0
      %v873 = vpop.f32.mrb[0].mxu0
      %v874 = vadd.f32 0.0, %v873
      %v875 = vpop.f32.mrb[0].mxu0
      %876 = vmatprep.mubr.bf16.mxu0 0
      %877 = vmatmul.mubr.bf16.gmra.mrb[0].mxu0 %v778
      %v878 = vpop.f32.mrb[0].mxu0
      %v879 = vadd.f32 0.0, %v878
      %v880 = vpop.f32.mrb[0].mxu0
      %v881 = vpop.f32.mrb[0].mxu0
      %v882 = vadd.f32 0.0, %v881
      %v883 = vpop.f32.mrb[0].mxu0
      %884 = vmatprep.mubr.bf16.mxu0 0
      %885 = vmatmul.mubr.bf16.gmra.mrb[0].mxu0 %v780
      %v886 = vpop.f32.mrb[0].mxu0
      %v887 = vadd.f32 0.0, %v886
      %v888 = vpop.f32.mrb[0].mxu0
      %v889 = vpop.f32.mrb[0].mxu0
      %v890 = vadd.f32 0.0, %v889
      %v891 = vpop.f32.mrb[0].mxu0
      %892 = vmatprep.mubr.bf16.mxu0 0
      %893 = vmatmul.mubr.bf16.gmra.mrb[0].mxu0 %v782
      %v894 = vpop.f32.mrb[0].mxu0
      %v895 = vadd.f32 0.0, %v894
      %v896 = vpop.f32.mrb[0].mxu0
      %v897 = vpop.f32.mrb[0].mxu0
      %v898 = vadd.f32 0.0, %v897
      %v899 = vpop.f32.mrb[0].mxu0
      %900 = vmatprep.mubr.bf16.mxu0 0
      %901 = vmatmul.mubr.bf16.gmra.mrb[0].mxu0 %v784
      %v902 = vpop.f32.mrb[0].mxu0
      %v903 = vadd.f32 0.0, %v902
      %v904 = vpop.f32.mrb[0].mxu0
      %v905 = vpop.f32.mrb[0].mxu0
      %v906 = vadd.f32 0.0, %v905
      %v907 = vpop.f32.mrb[0].mxu0
      %908 = vmatprep.mubr.bf16.mxu0 0
      %909 = vmatmul.mubr.bf16.gmra.mrb[0].mxu0 %v786
      %v910 = vpop.f32.mrb[0].mxu0
      %v911 = vadd.f32 0.0, %v910
      %v912 = vpop.f32.mrb[0].mxu0
      %v913 = vpop.f32.mrb[0].mxu0
      %v914 = vadd.f32 0.0, %v913
      %v915 = vpop.f32.mrb[0].mxu0
      %916 = vmatprep.mubr.bf16.mxu0 0
      %917 = vmatmul.mubr.bf16.gmra.mrb[0].mxu0 %v788
      %v918 = vpop.f32.mrb[0].mxu0
      %v919 = vadd.f32 0.0, %v918
      %v920 = vpop.f32.mrb[0].mxu0
      %v921 = vpop.f32.mrb[0].mxu0
      %v922 = vadd.f32 0.0, %v921
      %v923 = vpop.f32.mrb[0].mxu0
      %924 = vmatprep.mubr.bf16.mxu0 0
      %925 = vmatmul.mubr.bf16.gmra.mrb[0].mxu0 %v790
      %v926 = vpop.f32.mrb[0].mxu0
      %v927 = vadd.f32 0.0, %v926
      %v928 = vpop.f32.mrb[0].mxu0
      %v929 = vpop.f32.mrb[0].mxu0
      %v930 = vadd.f32 0.0, %v929
      %v931 = vpop.f32.mrb[0].mxu0
      %932 = vmatprep.mubr.bf16.mxu0 0
      %933 = vmatmul.mubr.bf16.gmra.mrb[0].mxu0 %v792
      %v934 = vpop.f32.mrb[0].mxu0
      %v935 = vadd.f32 0.0, %v934
      %v936 = vpop.f32.mrb[0].mxu0
      %v937 = vpop.f32.mrb[0].mxu0
      %v938 = vadd.f32 0.0, %v937
      %v939 = vpop.f32.mrb[0].mxu0
      %940 = vmatprep.mubr.bf16.mxu0 0
      %941 = vmatmul.mubr.bf16.gmra.mrb[0].mxu0 %v794
      %v942 = vpop.f32.mrb[0].mxu0
      %v943 = vadd.f32 0.0, %v942
      %v944 = vpop.f32.mrb[0].mxu0
      %v945 = vpop.f32.mrb[0].mxu0
      %v946 = vadd.f32 0.0, %v945
      %v947 = vpop.f32.mrb[0].mxu0
      %948 = vmatprep.mubr.bf16.mxu0 0
      %949 = vmatmul.mubr.bf16.gmra.mrb[0].mxu0 %v796
      %v950 = vpop.f32.mrb[0].mxu0
      %v951 = vadd.f32 0.0, %v950
      %v952 = vpop.f32.mrb[0].mxu0
      %v953 = vpop.f32.mrb[0].mxu0
      %v954 = vadd.f32 0.0, %v953
      %v955 = vpop.f32.mrb[0].mxu0
      %956 = vmatprep.mubr.bf16.mxu0 0
      %957 = vmatmul.mubr.bf16.gmra.mrb[0].mxu0 %v798
      %v958 = vpop.f32.mrb[0].mxu0
      %v959 = vadd.f32 0.0, %v958
      %v960 = vpop.f32.mrb[0].mxu0
      %v961 = vpop.f32.mrb[0].mxu0
      %v962 = vadd.f32 0.0, %v961
      %v963 = vpop.f32.mrb[0].mxu0
      %964 = vdwg.mxu0
      %v967 = vunpack.c.l.b16 %v726
      %v968 = vunpack.c.l.b16 %v727
      %v969 = vpack.c.b16 %v968, %v967
      %v970 = vsel %vm767, %v695, 0
      %v973 = vsel %vm800, %v969, 0
      %975 = vmatprep.subr.bf16.mxu0 0
      %976 = vmatpush1.bf16.msra.mxu0 %v973
      %977 = vmatprep.subr.bf16.mxu0 0
      %978 = vmatpush1.bf16.msra.mxu0 0
      %979 = vmatprep.subr.bf16.mxu0 0
      %980 = vmatpush1.bf16.msra.mxu0 0
      %981 = vmatprep.subr.bf16.mxu0 0
      %982 = vmatpush1.bf16.msra.mxu0 0
      %983 = vmatprep.subr.bf16.mxu0 0
      %984 = vmatpush1.bf16.msra.mxu0 0
      %985 = vmatprep.subr.bf16.mxu0 0
      %986 = vmatpush1.bf16.msra.mxu0 0
      %987 = vmatprep.subr.bf16.mxu0 0
      %988 = vmatpush1.bf16.msra.mxu0 0
      %989 = vmatprep.subr.bf16.mxu0 0
      %990 = vmatpush1.bf16.msra.mxu0 0
      %991 = vmatprep.subr.bf16.mxu0 0
      %992 = vmatpush1.bf16.msra.mxu0 0
      %993 = vmatprep.subr.bf16.mxu0 0
      %994 = vmatpush1.bf16.msra.mxu0 0
      %995 = vmatprep.subr.bf16.mxu0 0
      %996 = vmatpush1.bf16.msra.mxu0 0
      %997 = vmatprep.subr.bf16.mxu0 0
      %998 = vmatpush1.bf16.msra.mxu0 0
      %999 = vmatprep.subr.bf16.mxu0 0
      %1000 = vmatpush1.bf16.msra.mxu0 0
      %1001 = vmatprep.subr.bf16.mxu0 0
      %1002 = vmatpush1.bf16.msra.mxu0 0
      %1003 = vmatprep.subr.bf16.mxu0 0
      %1004 = vmatpush1.bf16.msra.mxu0 0
      %1005 = vmatprep.subr.bf16.mxu0 0
      %1006 = vmatpush1.bf16.msra.mxu0 0
      %1007 = vmatprep.mubr.bf16.mxu0 0
      %1008 = vmatmul.mubr.bf16.gmra.mrb[0].mxu0 %v970
      %v1009 = vpop.f32.mrb[0].mxu0
      %v1010 = vadd.f32 %v839, %v1009
      %v1011 = vpop.f32.mrb[0].mxu0
      %v1012 = vpop.f32.mrb[0].mxu0
      %v1013 = vadd.f32 %v842, %v1012
      %v1014 = vpop.f32.mrb[0].mxu0
      %1015 = vmatprep.mubr.bf16.mxu0 0
      %1016 = vmatmul.mubr.bf16.gmra.mrb[0].mxu0 %v768
      %v1017 = vpop.f32.mrb[0].mxu0
      %v1018 = vadd.f32 %v847, %v1017
      %v1019 = vpop.f32.mrb[0].mxu0
      %v1020 = vpop.f32.mrb[0].mxu0
      %v1021 = vadd.f32 %v850, %v1020
      %v1022 = vpop.f32.mrb[0].mxu0
      %1023 = vmatprep.mubr.bf16.mxu0 0
      %1024 = vmatmul.mubr.bf16.gmra.mrb[0].mxu0 %v770
      %v1025 = vpop.f32.mrb[0].mxu0
      %v1026 = vadd.f32 %v855, %v1025
      %v1027 = vpop.f32.mrb[0].mxu0
      %v1028 = vpop.f32.mrb[0].mxu0
      %v1029 = vadd.f32 %v858, %v1028
      %v1030 = vpop.f32.mrb[0].mxu0
      %1031 = vmatprep.mubr.bf16.mxu0 0
      %1032 = vmatmul.mubr.bf16.gmra.mrb[0].mxu0 %v772
      %v1033 = vpop.f32.mrb[0].mxu0
      %v1034 = vadd.f32 %v863, %v1033
      %v1035 = vpop.f32.mrb[0].mxu0
      %v1036 = vpop.f32.mrb[0].mxu0
      %v1037 = vadd.f32 %v866, %v1036
      %v1038 = vpop.f32.mrb[0].mxu0
      %1039 = vmatprep.mubr.bf16.mxu0 0
      %1040 = vmatmul.mubr.bf16.gmra.mrb[0].mxu0 %v774
      %v1041 = vpop.f32.mrb[0].mxu0
      %v1042 = vadd.f32 %v871, %v1041
      %v1043 = vpop.f32.mrb[0].mxu0
      %v1044 = vpop.f32.mrb[0].mxu0
      %v1045 = vadd.f32 %v874, %v1044
      %v1046 = vpop.f32.mrb[0].mxu0
      %1047 = vmatprep.mubr.bf16.mxu0 0
      %1048 = vmatmul.mubr.bf16.gmra.mrb[0].mxu0 %v776
      %v1049 = vpop.f32.mrb[0].mxu0
      %v1050 = vadd.f32 %v879, %v1049
      %v1051 = vpop.f32.mrb[0].mxu0
      %v1052 = vpop.f32.mrb[0].mxu0
      %v1053 = vadd.f32 %v882, %v1052
      %v1054 = vpop.f32.mrb[0].mxu0
      %1055 = vmatprep.mubr.bf16.mxu0 0
      %1056 = vmatmul.mubr.bf16.gmra.mrb[0].mxu0 %v778
      %v1057 = vpop.f32.mrb[0].mxu0
      %v1058 = vadd.f32 %v887, %v1057
      %v1059 = vpop.f32.mrb[0].mxu0
      %v1060 = vpop.f32.mrb[0].mxu0
      %v1061 = vadd.f32 %v890, %v1060
      %v1062 = vpop.f32.mrb[0].mxu0
      %1063 = vmatprep.mubr.bf16.mxu0 0
      %1064 = vmatmul.mubr.bf16.gmra.mrb[0].mxu0 %v780
      %v1065 = vpop.f32.mrb[0].mxu0
      %v1066 = vadd.f32 %v895, %v1065
      %v1067 = vpop.f32.mrb[0].mxu0
      %v1068 = vpop.f32.mrb[0].mxu0
      %v1069 = vadd.f32 %v898, %v1068
      %v1070 = vpop.f32.mrb[0].mxu0
      %1071 = vmatprep.mubr.bf16.mxu0 0
      %1072 = vmatmul.mubr.bf16.gmra.mrb[0].mxu0 %v782
      %v1073 = vpop.f32.mrb[0].mxu0
      %v1074 = vadd.f32 %v903, %v1073
      %v1075 = vpop.f32.mrb[0].mxu0
      %v1076 = vpop.f32.mrb[0].mxu0
      %v1077 = vadd.f32 %v906, %v1076
      %v1078 = vpop.f32.mrb[0].mxu0
      %1079 = vmatprep.mubr.bf16.mxu0 0
      %1080 = vmatmul.mubr.bf16.gmra.mrb[0].mxu0 %v784
      %v1081 = vpop.f32.mrb[0].mxu0
      %v1082 = vadd.f32 %v911, %v1081
      %v1083 = vpop.f32.mrb[0].mxu0
      %v1084 = vpop.f32.mrb[0].mxu0
      %v1085 = vadd.f32 %v914, %v1084
      %v1086 = vpop.f32.mrb[0].mxu0
      %1087 = vmatprep.mubr.bf16.mxu0 0
      %1088 = vmatmul.mubr.bf16.gmra.mrb[0].mxu0 %v786
      %v1089 = vpop.f32.mrb[0].mxu0
      %v1090 = vadd.f32 %v919, %v1089
      %v1091 = vpop.f32.mrb[0].mxu0
      %v1092 = vpop.f32.mrb[0].mxu0
      %v1093 = vadd.f32 %v922, %v1092
      %v1094 = vpop.f32.mrb[0].mxu0
      %1095 = vmatprep.mubr.bf16.mxu0 0
      %1096 = vmatmul.mubr.bf16.gmra.mrb[0].mxu0 %v788
      %v1097 = vpop.f32.mrb[0].mxu0
      %v1098 = vadd.f32 %v927, %v1097
      %v1099 = vpop.f32.mrb[0].mxu0
      %v1100 = vpop.f32.mrb[0].mxu0
      %v1101 = vadd.f32 %v930, %v1100
      %v1102 = vpop.f32.mrb[0].mxu0
      %1103 = vmatprep.mubr.bf16.mxu0 0
      %1104 = vmatmul.mubr.bf16.gmra.mrb[0].mxu0 %v790
      %v1105 = vpop.f32.mrb[0].mxu0
      %v1106 = vadd.f32 %v935, %v1105
      %v1107 = vpop.f32.mrb[0].mxu0
      %v1108 = vpop.f32.mrb[0].mxu0
      %v1109 = vadd.f32 %v938, %v1108
      %v1110 = vpop.f32.mrb[0].mxu0
      %1111 = vmatprep.mubr.bf16.mxu0 0
      %1112 = vmatmul.mubr.bf16.gmra.mrb[0].mxu0 %v792
      %v1113 = vpop.f32.mrb[0].mxu0
      %v1114 = vadd.f32 %v943, %v1113
      %v1115 = vpop.f32.mrb[0].mxu0
      %v1116 = vpop.f32.mrb[0].mxu0
      %v1117 = vadd.f32 %v946, %v1116
      %v1118 = vpop.f32.mrb[0].mxu0
      %1119 = vmatprep.mubr.bf16.mxu0 0
      %1120 = vmatmul.mubr.bf16.gmra.mrb[0].mxu0 %v794
      %v1121 = vpop.f32.mrb[0].mxu0
      %v1122 = vadd.f32 %v951, %v1121
      %v1123 = vpop.f32.mrb[0].mxu0
      %v1124 = vpop.f32.mrb[0].mxu0
      %v1125 = vadd.f32 %v954, %v1124
      %v1126 = vpop.f32.mrb[0].mxu0
      %1127 = vmatprep.mubr.bf16.mxu0 0
      %1128 = vmatmul.mubr.bf16.gmra.mrb[0].mxu0 %v796
      %v1129 = vpop.f32.mrb[0].mxu0
      %v1130 = vadd.f32 %v959, %v1129
      %v1131 = vpop.f32.mrb[0].mxu0
      %v1132 = vpop.f32.mrb[0].mxu0
      %v1133 = vadd.f32 %v962, %v1132
      %v1134 = vpop.f32.mrb[0].mxu0
      %1135 = vdwg.mxu0
      %v1138 = vunpack.c.l.b16 %v223
      %v1139 = vunpack.c.l.b16 %v224
      %v1140 = vpack.c.b16 %v1139, %v1138
      %v1142 = vunpack.c.l.b16 %v225
      %v1143 = vpack.c.b16 %v1142, %v1142
      %v1145 = vshrl.u32 %v1140, 16
      %v1147 = vshll.u32 %v1140, 16
      %v1149 = vrot.slane %v1147, 1
      %v1150 = vor.u32 %v1145, %v1149
      %v1152 = vshll.u32 %v1143, 16
      %v1154 = vrot.slane %v1152, 1
      %v1155 = vsel %vm354, %v1150, %v1154
      %1156 = vrot.lane.b32.xlu0 %v1155, 4
      %v1157 = vpop.permute.xlu0 %1156
      %v1158 = vrot.slane %v1140, 1
      %v1159 = vrot.slane %v1143, 1
      %v1160 = vsel %vm579, %v1158, %v1159
      %1161 = vrot.lane.b32.xlu0 %v1160, 8
      %v1162 = vpop.permute.xlu0 %1161
      %v1164 = vsel %vm660, %v1140, %v1157
      %v1166 = vsel %vm693, %v1164, %v1162
      %s1167 = scalar_lea.vmem %s1, 16
      %v1168 = vld [vmem:[%s1167] sm:$0xf]
      %v1169 = vld [vmem:[%s1167 + $0x4] sm:$0x3]
      %v1172 = vunpack.c.l.b16 %v1168
      %v1173 = vunpack.c.l.b16 %v1169
      %v1174 = vpack.c.b16 %v1173, %v1172
      %v1175 = vsel %vm767, %v1166, 0
      %v1178 = vsel %vm800, %v1174, 0
      %1180 = vmatprep.subr.bf16.mxu0 0
      %1181 = vmatpush1.bf16.msra.mxu0 %v1178
      %1182 = vmatprep.subr.bf16.mxu0 0
      %1183 = vmatpush1.bf16.msra.mxu0 0
      %1184 = vmatprep.subr.bf16.mxu0 0
      %1185 = vmatpush1.bf16.msra.mxu0 0
      %1186 = vmatprep.subr.bf16.mxu0 0
      %1187 = vmatpush1.bf16.msra.mxu0 0
      %1188 = vmatprep.subr.bf16.mxu0 0
      %1189 = vmatpush1.bf16.msra.mxu0 0
      %1190 = vmatprep.subr.bf16.mxu0 0
      %1191 = vmatpush1.bf16.msra.mxu0 0
      %1192 = vmatprep.subr.bf16.mxu0 0
      %1193 = vmatpush1.bf16.msra.mxu0 0
      %1194 = vmatprep.subr.bf16.mxu0 0
      %1195 = vmatpush1.bf16.msra.mxu0 0
      %1196 = vmatprep.subr.bf16.mxu0 0
      %1197 = vmatpush1.bf16.msra.mxu0 0
      %1198 = vmatprep.subr.bf16.mxu0 0
      %1199 = vmatpush1.bf16.msra.mxu0 0
      %1200 = vmatprep.subr.bf16.mxu0 0
      %1201 = vmatpush1.bf16.msra.mxu0 0
      %1202 = vmatprep.subr.bf16.mxu0 0
      %1203 = vmatpush1.bf16.msra.mxu0 0
      %1204 = vmatprep.subr.bf16.mxu0 0
      %1205 = vmatpush1.bf16.msra.mxu0 0
      %1206 = vmatprep.subr.bf16.mxu0 0
      %1207 = vmatpush1.bf16.msra.mxu0 0
      %1208 = vmatprep.subr.bf16.mxu0 0
      %1209 = vmatpush1.bf16.msra.mxu0 0
      %1210 = vmatprep.subr.bf16.mxu0 0
      %1211 = vmatpush1.bf16.msra.mxu0 0
      %1212 = vmatprep.mubr.bf16.mxu0 0
      %1213 = vmatmul.mubr.bf16.gmra.mrb[0].mxu0 %v770
      %v1214 = vpop.f32.mrb[0].mxu0
      %v1215 = vadd.f32 0.0, %v1214
      %v1216 = vpop.f32.mrb[0].mxu0
      %v1217 = vpop.f32.mrb[0].mxu0
      %v1218 = vadd.f32 0.0, %v1217
      %v1219 = vpop.f32.mrb[0].mxu0
      %1220 = vmatprep.mubr.bf16.mxu0 0
      %1221 = vmatmul.mubr.bf16.gmra.mrb[0].mxu0 %v772
      %v1222 = vpop.f32.mrb[0].mxu0
      %v1223 = vadd.f32 0.0, %v1222
      %v1224 = vpop.f32.mrb[0].mxu0
      %v1225 = vpop.f32.mrb[0].mxu0
      %v1226 = vadd.f32 0.0, %v1225
      %v1227 = vpop.f32.mrb[0].mxu0
      %1228 = vmatprep.mubr.bf16.mxu0 0
      %1229 = vmatmul.mubr.bf16.gmra.mrb[0].mxu0 %v774
      %v1230 = vpop.f32.mrb[0].mxu0
      %v1231 = vadd.f32 0.0, %v1230
      %v1232 = vpop.f32.mrb[0].mxu0
      %v1233 = vpop.f32.mrb[0].mxu0
      %v1234 = vadd.f32 0.0, %v1233
      %v1235 = vpop.f32.mrb[0].mxu0
      %1236 = vmatprep.mubr.bf16.mxu0 0
      %1237 = vmatmul.mubr.bf16.gmra.mrb[0].mxu0 %v776
      %v1238 = vpop.f32.mrb[0].mxu0
      %v1239 = vadd.f32 0.0, %v1238
      %v1240 = vpop.f32.mrb[0].mxu0
      %v1241 = vpop.f32.mrb[0].mxu0
      %v1242 = vadd.f32 0.0, %v1241
      %v1243 = vpop.f32.mrb[0].mxu0
      %1244 = vmatprep.mubr.bf16.mxu0 0
      %1245 = vmatmul.mubr.bf16.gmra.mrb[0].mxu0 %v778
      %v1246 = vpop.f32.mrb[0].mxu0
      %v1247 = vadd.f32 0.0, %v1246
      %v1248 = vpop.f32.mrb[0].mxu0
      %v1249 = vpop.f32.mrb[0].mxu0
      %v1250 = vadd.f32 0.0, %v1249
      %v1251 = vpop.f32.mrb[0].mxu0
      %1252 = vmatprep.mubr.bf16.mxu0 0
      %1253 = vmatmul.mubr.bf16.gmra.mrb[0].mxu0 %v780
      %v1254 = vpop.f32.mrb[0].mxu0
      %v1255 = vadd.f32 0.0, %v1254
      %v1256 = vpop.f32.mrb[0].mxu0
      %v1257 = vpop.f32.mrb[0].mxu0
      %v1258 = vadd.f32 0.0, %v1257
      %v1259 = vpop.f32.mrb[0].mxu0
      %1260 = vmatprep.mubr.bf16.mxu0 0
      %1261 = vmatmul.mubr.bf16.gmra.mrb[0].mxu0 %v782
      %v1262 = vpop.f32.mrb[0].mxu0
      %v1263 = vadd.f32 0.0, %v1262
      %v1264 = vpop.f32.mrb[0].mxu0
      %v1265 = vpop.f32.mrb[0].mxu0
      %v1266 = vadd.f32 0.0, %v1265
      %v1267 = vpop.f32.mrb[0].mxu0
      %1268 = vmatprep.mubr.bf16.mxu0 0
      %1269 = vmatmul.mubr.bf16.gmra.mrb[0].mxu0 %v784
      %v1270 = vpop.f32.mrb[0].mxu0
      %v1271 = vadd.f32 0.0, %v1270
      %v1272 = vpop.f32.mrb[0].mxu0
      %v1273 = vpop.f32.mrb[0].mxu0
      %v1274 = vadd.f32 0.0, %v1273
      %v1275 = vpop.f32.mrb[0].mxu0
      %1276 = vmatprep.mubr.bf16.mxu0 0
      %1277 = vmatmul.mubr.bf16.gmra.mrb[0].mxu0 %v786
      %v1278 = vpop.f32.mrb[0].mxu0
      %v1279 = vadd.f32 0.0, %v1278
      %v1280 = vpop.f32.mrb[0].mxu0
      %v1281 = vpop.f32.mrb[0].mxu0
      %v1282 = vadd.f32 0.0, %v1281
      %v1283 = vpop.f32.mrb[0].mxu0
      %1284 = vmatprep.mubr.bf16.mxu0 0
      %1285 = vmatmul.mubr.bf16.gmra.mrb[0].mxu0 %v788
      %v1286 = vpop.f32.mrb[0].mxu0
      %v1287 = vadd.f32 0.0, %v1286
      %v1288 = vpop.f32.mrb[0].mxu0
      %v1289 = vpop.f32.mrb[0].mxu0
      %v1290 = vadd.f32 0.0, %v1289
      %v1291 = vpop.f32.mrb[0].mxu0
      %1292 = vmatprep.mubr.bf16.mxu0 0
      %1293 = vmatmul.mubr.bf16.gmra.mrb[0].mxu0 %v790
      %v1294 = vpop.f32.mrb[0].mxu0
      %v1295 = vadd.f32 0.0, %v1294
      %v1296 = vpop.f32.mrb[0].mxu0
      %v1297 = vpop.f32.mrb[0].mxu0
      %v1298 = vadd.f32 0.0, %v1297
      %v1299 = vpop.f32.mrb[0].mxu0
      %1300 = vmatprep.mubr.bf16.mxu0 0
      %1301 = vmatmul.mubr.bf16.gmra.mrb[0].mxu0 %v792
      %v1302 = vpop.f32.mrb[0].mxu0
      %v1303 = vadd.f32 0.0, %v1302
      %v1304 = vpop.f32.mrb[0].mxu0
      %v1305 = vpop.f32.mrb[0].mxu0
      %v1306 = vadd.f32 0.0, %v1305
      %v1307 = vpop.f32.mrb[0].mxu0
      %1308 = vmatprep.mubr.bf16.mxu0 0
      %1309 = vmatmul.mubr.bf16.gmra.mrb[0].mxu0 %v794
      %v1310 = vpop.f32.mrb[0].mxu0
      %v1311 = vadd.f32 0.0, %v1310
      %v1312 = vpop.f32.mrb[0].mxu0
      %v1313 = vpop.f32.mrb[0].mxu0
      %v1314 = vadd.f32 0.0, %v1313
      %v1315 = vpop.f32.mrb[0].mxu0
      %1316 = vmatprep.mubr.bf16.mxu0 0
      %1317 = vmatmul.mubr.bf16.gmra.mrb[0].mxu0 %v796
      %v1318 = vpop.f32.mrb[0].mxu0
      %v1319 = vadd.f32 0.0, %v1318
      %v1320 = vpop.f32.mrb[0].mxu0
      %v1321 = vpop.f32.mrb[0].mxu0
      %v1322 = vadd.f32 0.0, %v1321
      %v1323 = vpop.f32.mrb[0].mxu0
      %1324 = vmatprep.mubr.bf16.mxu0 0
      %1325 = vmatmul.mubr.bf16.gmra.mrb[0].mxu0 %v798
      %v1326 = vpop.f32.mrb[0].mxu0
      %v1327 = vadd.f32 0.0, %v1326
      %v1328 = vpop.f32.mrb[0].mxu0
      %v1329 = vpop.f32.mrb[0].mxu0
      %v1330 = vadd.f32 0.0, %v1329
      %v1331 = vpop.f32.mrb[0].mxu0
      %1332 = vmatprep.mubr.bf16.mxu0 0
      %1333 = vmatmul.mubr.bf16.gmra.mrb[0].mxu0 %v1175
      %v1334 = vpop.f32.mrb[0].mxu0
      %v1335 = vadd.f32 0.0, %v1334
      %v1336 = vpop.f32.mrb[0].mxu0
      %v1337 = vpop.f32.mrb[0].mxu0
      %v1338 = vadd.f32 0.0, %v1337
      %v1339 = vpop.f32.mrb[0].mxu0
      %1340 = vdwg.mxu0
      %v1341 = vadd.f32 %v1010, %v1215
      %v1342 = vadd.f32 %v1013, %v1218
      %v1343 = vadd.f32 %v1018, %v1223
      %v1344 = vadd.f32 %v1021, %v1226
      %v1345 = vadd.f32 %v1026, %v1231
      %v1346 = vadd.f32 %v1029, %v1234
      %v1347 = vadd.f32 %v1034, %v1239
      %v1348 = vadd.f32 %v1037, %v1242
      %v1349 = vadd.f32 %v1042, %v1247
      %v1350 = vadd.f32 %v1045, %v1250
      %v1351 = vadd.f32 %v1050, %v1255
      %v1352 = vadd.f32 %v1053, %v1258
      %v1353 = vadd.f32 %v1058, %v1263
      %v1354 = vadd.f32 %v1061, %v1266
      %v1355 = vadd.f32 %v1066, %v1271
      %v1356 = vadd.f32 %v1069, %v1274
      %v1357 = vadd.f32 %v1074, %v1279
      %v1358 = vadd.f32 %v1077, %v1282
      %v1359 = vadd.f32 %v1082, %v1287
      %v1360 = vadd.f32 %v1085, %v1290
      %v1361 = vadd.f32 %v1090, %v1295
      %v1362 = vadd.f32 %v1093, %v1298
      %v1363 = vadd.f32 %v1098, %v1303
      %v1364 = vadd.f32 %v1101, %v1306
      %v1365 = vadd.f32 %v1106, %v1311
      %v1366 = vadd.f32 %v1109, %v1314
      %v1367 = vadd.f32 %v1114, %v1319
      %v1368 = vadd.f32 %v1117, %v1322
      %v1369 = vadd.f32 %v1122, %v1327
      %v1370 = vadd.f32 %v1125, %v1330
      %v1371 = vadd.f32 %v1130, %v1335
      %v1372 = vadd.f32 %v1133, %v1338
      %v1373 = vld [vmem:[%s2] sm:$0x1]
      %v1375 = vlaneseq
      %v1376 = vshrl.u32 %v1375, 7
      %v1377 = vsub.s32 0, %v1376
      %v1378 = vrot.slane %v1373, %v1377
      %v1380 = vadd.f32 %v1341, %v1378
      %v1381 = vadd.f32 %v1342, %v1378
      %v1382 = vadd.f32 %v1343, %v1378
      %v1383 = vadd.f32 %v1344, %v1378
      %v1384 = vadd.f32 %v1345, %v1378
      %v1385 = vadd.f32 %v1346, %v1378
      %v1386 = vadd.f32 %v1347, %v1378
      %v1387 = vadd.f32 %v1348, %v1378
      %v1388 = vadd.f32 %v1349, %v1378
      %v1389 = vadd.f32 %v1350, %v1378
      %v1390 = vadd.f32 %v1351, %v1378
      %v1391 = vadd.f32 %v1352, %v1378
      %v1392 = vadd.f32 %v1353, %v1378
      %v1393 = vadd.f32 %v1354, %v1378
      %v1394 = vadd.f32 %v1355, %v1378
      %v1395 = vadd.f32 %v1356, %v1378
      %v1396 = vadd.f32 %v1357, %v1378
      %v1397 = vadd.f32 %v1358, %v1378
      %v1398 = vadd.f32 %v1359, %v1378
      %v1399 = vadd.f32 %v1360, %v1378
      %v1400 = vadd.f32 %v1361, %v1378
      %v1401 = vadd.f32 %v1362, %v1378
      %v1402 = vadd.f32 %v1363, %v1378
      %v1403 = vadd.f32 %v1364, %v1378
      %v1404 = vadd.f32 %v1365, %v1378
      %v1405 = vadd.f32 %v1366, %v1378
      %v1406 = vadd.f32 %v1367, %v1378
      %v1407 = vadd.f32 %v1368, %v1378
      %v1408 = vadd.f32 %v1369, %v1378
      %v1409 = vadd.f32 %v1370, %v1378
      %v1410 = vadd.f32 %v1371, %v1378
      %v1411 = vadd.f32 %v1372, %v1378
      %vm1412 = vcmask 261120
      %v1413 = vsel %vm1412, %v1380, 0.0
      %v1414 = vsel %vm1412, %v1381, 0.0
      %v1415 = vadd.f32 %v1413, %v1414
      %v1416 = vsel %vm1412, %v1382, 0.0
      %v1417 = vadd.f32 %v1415, %v1416
      %v1418 = vsel %vm1412, %v1383, 0.0
      %v1419 = vadd.f32 %v1417, %v1418
      %v1420 = vsel %vm1412, %v1384, 0.0
      %v1421 = vadd.f32 %v1419, %v1420
      %v1422 = vsel %vm1412, %v1385, 0.0
      %v1423 = vadd.f32 %v1421, %v1422
      %v1424 = vsel %vm1412, %v1386, 0.0
      %v1425 = vadd.f32 %v1423, %v1424
      %v1426 = vsel %vm1412, %v1387, 0.0
      %v1427 = vadd.f32 %v1425, %v1426
      %v1428 = vsel %vm1412, %v1388, 0.0
      %v1429 = vadd.f32 %v1427, %v1428
      %v1430 = vsel %vm1412, %v1389, 0.0
      %v1431 = vadd.f32 %v1429, %v1430
      %v1432 = vsel %vm1412, %v1390, 0.0
      %v1433 = vadd.f32 %v1431, %v1432
      %v1434 = vsel %vm1412, %v1391, 0.0
      %v1435 = vadd.f32 %v1433, %v1434
      %v1436 = vsel %vm1412, %v1392, 0.0
      %v1437 = vadd.f32 %v1435, %v1436
      %v1438 = vsel %vm1412, %v1393, 0.0
      %v1439 = vadd.f32 %v1437, %v1438
      %v1440 = vsel %vm1412, %v1394, 0.0
      %v1441 = vadd.f32 %v1439, %v1440
      %v1442 = vsel %vm1412, %v1395, 0.0
      %v1443 = vadd.f32 %v1441, %v1442
      %v1444 = vsel %vm1412, %v1396, 0.0
      %v1445 = vadd.f32 %v1443, %v1444
      %v1446 = vsel %vm1412, %v1397, 0.0
      %v1447 = vadd.f32 %v1445, %v1446
      %v1448 = vsel %vm1412, %v1398, 0.0
      %v1449 = vadd.f32 %v1447, %v1448
      %v1450 = vsel %vm1412, %v1399, 0.0
      %v1451 = vadd.f32 %v1449, %v1450
      %v1452 = vsel %vm1412, %v1400, 0.0
      %v1453 = vadd.f32 %v1451, %v1452
      %v1454 = vsel %vm1412, %v1401, 0.0
      %v1455 = vadd.f32 %v1453, %v1454
      %v1456 = vsel %vm1412, %v1402, 0.0
      %v1457 = vadd.f32 %v1455, %v1456
      %v1458 = vsel %vm1412, %v1403, 0.0
      %v1459 = vadd.f32 %v1457, %v1458
      %v1460 = vsel %vm1412, %v1404, 0.0
      %v1461 = vadd.f32 %v1459, %v1460
      %v1462 = vsel %vm1412, %v1405, 0.0
      %v1463 = vadd.f32 %v1461, %v1462
      %v1464 = vsel %vm1412, %v1406, 0.0
      %v1465 = vadd.f32 %v1463, %v1464
      %v1466 = vsel %vm1412, %v1407, 0.0
      %v1467 = vadd.f32 %v1465, %v1466
      %v1468 = vsel %vm1412, %v1408, 0.0
      %v1469 = vadd.f32 %v1467, %v1468
      %v1470 = vsel %vm1412, %v1409, 0.0
      %v1471 = vadd.f32 %v1469, %v1470
      %v1472 = vsel %vm1412, %v1410, 0.0
      %v1473 = vadd.f32 %v1471, %v1472
      %v1474 = vsel %vm1412, %v1411, 0.0
      %v1475 = vadd.f32 %v1473, %v1474
      %v1476 = vrot.slane %v1475, 4
      %v1477 = vadd.f32 %v1475, %v1476
      %v1478 = vrot.slane %v1477, 2
      %v1479 = vadd.f32 %v1477, %v1478
      %v1480 = vrot.slane %v1479, 1
      %v1481 = vadd.f32 %v1479, %v1480
      %v1482 = vmul.f32 %v1380, %v1380
      %v1483 = vmul.f32 %v1381, %v1381
      %v1484 = vmul.f32 %v1382, %v1382
      %v1485 = vmul.f32 %v1383, %v1383
      %v1486 = vmul.f32 %v1384, %v1384
      %v1487 = vmul.f32 %v1385, %v1385
      %v1488 = vmul.f32 %v1386, %v1386
      %v1489 = vmul.f32 %v1387, %v1387
      %v1490 = vmul.f32 %v1388, %v1388
      %v1491 = vmul.f32 %v1389, %v1389
      %v1492 = vmul.f32 %v1390, %v1390
      %v1493 = vmul.f32 %v1391, %v1391
      %v1494 = vmul.f32 %v1392, %v1392
      %v1495 = vmul.f32 %v1393, %v1393
      %v1496 = vmul.f32 %v1394, %v1394
      %v1497 = vmul.f32 %v1395, %v1395
      %v1498 = vmul.f32 %v1396, %v1396
      %v1499 = vmul.f32 %v1397, %v1397
      %v1500 = vmul.f32 %v1398, %v1398
      %v1501 = vmul.f32 %v1399, %v1399
      %v1502 = vmul.f32 %v1400, %v1400
      %v1503 = vmul.f32 %v1401, %v1401
      %v1504 = vmul.f32 %v1402, %v1402
      %v1505 = vmul.f32 %v1403, %v1403
      %v1506 = vmul.f32 %v1404, %v1404
      %v1507 = vmul.f32 %v1405, %v1405
      %v1508 = vmul.f32 %v1406, %v1406
      %v1509 = vmul.f32 %v1407, %v1407
      %v1510 = vmul.f32 %v1408, %v1408
      %v1511 = vmul.f32 %v1409, %v1409
      %v1512 = vmul.f32 %v1410, %v1410
      %v1513 = vmul.f32 %v1411, %v1411
      %v1514 = vsel %vm1412, %v1482, 0.0
      %v1515 = vsel %vm1412, %v1483, 0.0
      %v1516 = vadd.f32 %v1514, %v1515
      %v1517 = vsel %vm1412, %v1484, 0.0
      %v1518 = vadd.f32 %v1516, %v1517
      %v1519 = vsel %vm1412, %v1485, 0.0
      %v1520 = vadd.f32 %v1518, %v1519
      %v1521 = vsel %vm1412, %v1486, 0.0
      %v1522 = vadd.f32 %v1520, %v1521
      %v1523 = vsel %vm1412, %v1487, 0.0
      %v1524 = vadd.f32 %v1522, %v1523
      %v1525 = vsel %vm1412, %v1488, 0.0
      %v1526 = vadd.f32 %v1524, %v1525
      %v1527 = vsel %vm1412, %v1489, 0.0
      %v1528 = vadd.f32 %v1526, %v1527
      %v1529 = vsel %vm1412, %v1490, 0.0
      %v1530 = vadd.f32 %v1528, %v1529
      %v1531 = vsel %vm1412, %v1491, 0.0
      %v1532 = vadd.f32 %v1530, %v1531
      %v1533 = vsel %vm1412, %v1492, 0.0
      %v1534 = vadd.f32 %v1532, %v1533
      %v1535 = vsel %vm1412, %v1493, 0.0
      %v1536 = vadd.f32 %v1534, %v1535
      %v1537 = vsel %vm1412, %v1494, 0.0
      %v1538 = vadd.f32 %v1536, %v1537
      %v1539 = vsel %vm1412, %v1495, 0.0
      %v1540 = vadd.f32 %v1538, %v1539
      %v1541 = vsel %vm1412, %v1496, 0.0
      %v1542 = vadd.f32 %v1540, %v1541
      %v1543 = vsel %vm1412, %v1497, 0.0
      %v1544 = vadd.f32 %v1542, %v1543
      %v1545 = vsel %vm1412, %v1498, 0.0
      %v1546 = vadd.f32 %v1544, %v1545
      %v1547 = vsel %vm1412, %v1499, 0.0
      %v1548 = vadd.f32 %v1546, %v1547
      %v1549 = vsel %vm1412, %v1500, 0.0
      %v1550 = vadd.f32 %v1548, %v1549
      %v1551 = vsel %vm1412, %v1501, 0.0
      %v1552 = vadd.f32 %v1550, %v1551
      %v1553 = vsel %vm1412, %v1502, 0.0
      %v1554 = vadd.f32 %v1552, %v1553
      %v1555 = vsel %vm1412, %v1503, 0.0
      %v1556 = vadd.f32 %v1554, %v1555
      %v1557 = vsel %vm1412, %v1504, 0.0
      %v1558 = vadd.f32 %v1556, %v1557
      %v1559 = vsel %vm1412, %v1505, 0.0
      %v1560 = vadd.f32 %v1558, %v1559
      %v1561 = vsel %vm1412, %v1506, 0.0
      %v1562 = vadd.f32 %v1560, %v1561
      %v1563 = vsel %vm1412, %v1507, 0.0
      %v1564 = vadd.f32 %v1562, %v1563
      %v1565 = vsel %vm1412, %v1508, 0.0
      %v1566 = vadd.f32 %v1564, %v1565
      %v1567 = vsel %vm1412, %v1509, 0.0
      %v1568 = vadd.f32 %v1566, %v1567
      %v1569 = vsel %vm1412, %v1510, 0.0
      %v1570 = vadd.f32 %v1568, %v1569
      %v1571 = vsel %vm1412, %v1511, 0.0
      %v1572 = vadd.f32 %v1570, %v1571
      %v1573 = vsel %vm1412, %v1512, 0.0
      %v1574 = vadd.f32 %v1572, %v1573
      %v1575 = vsel %vm1412, %v1513, 0.0
      %v1576 = vadd.f32 %v1574, %v1575
      %v1577 = vrot.slane %v1576, 4
      %v1578 = vadd.f32 %v1576, %v1577
      %v1579 = vrot.slane %v1578, 2
      %v1580 = vadd.f32 %v1578, %v1579
      %v1581 = vrot.slane %v1580, 1
      %v1582 = vadd.f32 %v1580, %v1581
      %v1583 = vmul.f32 %v1481, 0.00390625
      %v1584 = vmul.f32 %v1582, 0.00390625
      %v1585 = vmul.f32 %v1583, %v1583
      %v1586 = vsub.f32 %v1584, %v1585
      %v1587 = vmax.f32 %v1586, 0.0
      %v1588 = vsub.f32 %v1380, %v1583
      %v1589 = vsub.f32 %v1381, %v1583
      %v1590 = vsub.f32 %v1382, %v1583
      %v1591 = vsub.f32 %v1383, %v1583
      %v1592 = vsub.f32 %v1384, %v1583
      %v1593 = vsub.f32 %v1385, %v1583
      %v1594 = vsub.f32 %v1386, %v1583
      %v1595 = vsub.f32 %v1387, %v1583
      %v1596 = vsub.f32 %v1388, %v1583
      %v1597 = vsub.f32 %v1389, %v1583
      %v1598 = vsub.f32 %v1390, %v1583
      %v1599 = vsub.f32 %v1391, %v1583
      %v1600 = vsub.f32 %v1392, %v1583
      %v1601 = vsub.f32 %v1393, %v1583
      %v1602 = vsub.f32 %v1394, %v1583
      %v1603 = vsub.f32 %v1395, %v1583
      %v1604 = vsub.f32 %v1396, %v1583
      %v1605 = vsub.f32 %v1397, %v1583
      %v1606 = vsub.f32 %v1398, %v1583
      %v1607 = vsub.f32 %v1399, %v1583
      %v1608 = vsub.f32 %v1400, %v1583
      %v1609 = vsub.f32 %v1401, %v1583
      %v1610 = vsub.f32 %v1402, %v1583
      %v1611 = vsub.f32 %v1403, %v1583
      %v1612 = vsub.f32 %v1404, %v1583
      %v1613 = vsub.f32 %v1405, %v1583
      %v1614 = vsub.f32 %v1406, %v1583
      %v1615 = vsub.f32 %v1407, %v1583
      %v1616 = vsub.f32 %v1408, %v1583
      %v1617 = vsub.f32 %v1409, %v1583
      %v1618 = vsub.f32 %v1410, %v1583
      %v1619 = vsub.f32 %v1411, %v1583
      %v1620 = vadd.f32 %v1587, 1e-05
      %v1621 = vrsqrt.pop %v1620
      %v1622 = vmul.f32 %v1588, %v1621
      %v1623 = vmul.f32 %v1589, %v1621
      %v1624 = vmul.f32 %v1590, %v1621
      %v1625 = vmul.f32 %v1591, %v1621
      %v1626 = vmul.f32 %v1592, %v1621
      %v1627 = vmul.f32 %v1593, %v1621
      %v1628 = vmul.f32 %v1594, %v1621
      %v1629 = vmul.f32 %v1595, %v1621
      %v1630 = vmul.f32 %v1596, %v1621
      %v1631 = vmul.f32 %v1597, %v1621
      %v1632 = vmul.f32 %v1598, %v1621
      %v1633 = vmul.f32 %v1599, %v1621
      %v1634 = vmul.f32 %v1600, %v1621
      %v1635 = vmul.f32 %v1601, %v1621
      %v1636 = vmul.f32 %v1602, %v1621
      %v1637 = vmul.f32 %v1603, %v1621
      %v1638 = vmul.f32 %v1604, %v1621
      %v1639 = vmul.f32 %v1605, %v1621
      %v1640 = vmul.f32 %v1606, %v1621
      %v1641 = vmul.f32 %v1607, %v1621
      %v1642 = vmul.f32 %v1608, %v1621
      %v1643 = vmul.f32 %v1609, %v1621
      %v1644 = vmul.f32 %v1610, %v1621
      %v1645 = vmul.f32 %v1611, %v1621
      %v1646 = vmul.f32 %v1612, %v1621
      %v1647 = vmul.f32 %v1613, %v1621
      %v1648 = vmul.f32 %v1614, %v1621
      %v1649 = vmul.f32 %v1615, %v1621
      %v1650 = vmul.f32 %v1616, %v1621
      %v1651 = vmul.f32 %v1617, %v1621
      %v1652 = vmul.f32 %v1618, %v1621
      %v1653 = vmul.f32 %v1619, %v1621
      %v1654 = vmax.f32 %v1622, 0.0
      %v1655 = vmax.f32 %v1623, 0.0
      %v1656 = vmax.f32 %v1624, 0.0
      %v1657 = vmax.f32 %v1625, 0.0
      %v1658 = vmax.f32 %v1626, 0.0
      %v1659 = vmax.f32 %v1627, 0.0
      %v1660 = vmax.f32 %v1628, 0.0
      %v1661 = vmax.f32 %v1629, 0.0
      %v1662 = vmax.f32 %v1630, 0.0
      %v1663 = vmax.f32 %v1631, 0.0
      %v1664 = vmax.f32 %v1632, 0.0
      %v1665 = vmax.f32 %v1633, 0.0
      %v1666 = vmax.f32 %v1634, 0.0
      %v1667 = vmax.f32 %v1635, 0.0
      %v1668 = vmax.f32 %v1636, 0.0
      %v1669 = vmax.f32 %v1637, 0.0
      %v1670 = vmax.f32 %v1638, 0.0
      %v1671 = vmax.f32 %v1639, 0.0
      %v1672 = vmax.f32 %v1640, 0.0
      %v1673 = vmax.f32 %v1641, 0.0
      %v1674 = vmax.f32 %v1642, 0.0
      %v1675 = vmax.f32 %v1643, 0.0
      %v1676 = vmax.f32 %v1644, 0.0
      %v1677 = vmax.f32 %v1645, 0.0
      %v1678 = vmax.f32 %v1646, 0.0
      %v1679 = vmax.f32 %v1647, 0.0
      %v1680 = vmax.f32 %v1648, 0.0
      %v1681 = vmax.f32 %v1649, 0.0
      %v1682 = vmax.f32 %v1650, 0.0
      %v1683 = vmax.f32 %v1651, 0.0
      %v1684 = vmax.f32 %v1652, 0.0
      %v1685 = vmax.f32 %v1653, 0.0
      %1686 = vxpose.xlu0.b32.start [1/16] %v1654, 128
      %1687 = vxpose.xlu0.b32.cont [2/16] %v1655, 128
      %1688 = vxpose.xlu0.b32.cont [3/16] %v1656, 128
      %1689 = vxpose.xlu0.b32.cont [4/16] %v1657, 128
      %1690 = vxpose.xlu0.b32.cont [5/16] %v1658, 128
      %1691 = vxpose.xlu0.b32.cont [6/16] %v1659, 128
      %1692 = vxpose.xlu0.b32.cont [7/16] %v1660, 128
      %1693 = vxpose.xlu0.b32.cont [8/16] %v1661, 128
      %1694 = vxpose.xlu0.b32.cont [9/16] %v1662, 128
      %1695 = vxpose.xlu0.b32.cont [10/16] %v1663, 128
      %1696 = vxpose.xlu0.b32.cont [11/16] %v1664, 128
      %1697 = vxpose.xlu0.b32.cont [12/16] %v1665, 128
      %1698 = vxpose.xlu0.b32.cont [13/16] %v1666, 128
      %1699 = vxpose.xlu0.b32.cont [14/16] %v1667, 128
      %1700 = vxpose.xlu0.b32.cont [15/16] %v1668, 128
      %1701 = vxpose.xlu0.b32.end [16/16] %v1669, 128
      %v1702 = vpop.trf.xlu0
      %v1703 = vpop.trf.xlu0
      %v1704 = vpop.trf.xlu0
      %v1705 = vpop.trf.xlu0
      %v1706 = vpop.trf.xlu0
      %v1707 = vpop.trf.xlu0
      %v1708 = vpop.trf.xlu0
      %v1709 = vpop.trf.xlu0
      %v1710 = vpop.trf.xlu0
      %v1711 = vpop.trf.xlu0
      %v1712 = vpop.trf.xlu0
      %v1713 = vpop.trf.xlu0
      %v1714 = vpop.trf.xlu0
      %v1715 = vpop.trf.xlu0
      %v1716 = vpop.trf.xlu0
      %v1717 = vpop.trf.xlu0
      %1718 = vxpose.xlu0.b32.start [1/16] %v1670, 128
      %1719 = vxpose.xlu0.b32.cont [2/16] %v1671, 128
      %1720 = vxpose.xlu0.b32.cont [3/16] %v1672, 128
      %1721 = vxpose.xlu0.b32.cont [4/16] %v1673, 128
      %1722 = vxpose.xlu0.b32.cont [5/16] %v1674, 128
      %1723 = vxpose.xlu0.b32.cont [6/16] %v1675, 128
      %1724 = vxpose.xlu0.b32.cont [7/16] %v1676, 128
      %1725 = vxpose.xlu0.b32.cont [8/16] %v1677, 128
      %1726 = vxpose.xlu0.b32.cont [9/16] %v1678, 128
      %1727 = vxpose.xlu0.b32.cont [10/16] %v1679, 128
      %1728 = vxpose.xlu0.b32.cont [11/16] %v1680, 128
      %1729 = vxpose.xlu0.b32.cont [12/16] %v1681, 128
      %1730 = vxpose.xlu0.b32.cont [13/16] %v1682, 128
      %1731 = vxpose.xlu0.b32.cont [14/16] %v1683, 128
      %1732 = vxpose.xlu0.b32.cont [15/16] %v1684, 128
      %1733 = vxpose.xlu0.b32.end [16/16] %v1685, 128
      %v1734 = vpop.trf.xlu0
      %v1735 = vpop.trf.xlu0
      %v1736 = vpop.trf.xlu0
      %v1737 = vpop.trf.xlu0
      %v1738 = vpop.trf.xlu0
      %v1739 = vpop.trf.xlu0
      %v1740 = vpop.trf.xlu0
      %v1741 = vpop.trf.xlu0
      %v1742 = vpop.trf.xlu0
      %v1743 = vpop.trf.xlu0
      %v1744 = vpop.trf.xlu0
      %v1745 = vpop.trf.xlu0
      %v1746 = vpop.trf.xlu0
      %v1747 = vpop.trf.xlu0
      %v1748 = vpop.trf.xlu0
      %v1749 = vpop.trf.xlu0
      %1750 = vst [vmem:[%s170] sm:$0xff] %v1702
      %1751 = vst [vmem:[%s170 + $0x8] sm:$0xff] %v1734
      %1752 = vst [vmem:[%s170 + $0x10] sm:$0xff] %v1703
      %1753 = vst [vmem:[%s170 + $0x18] sm:$0xff] %v1735
      %1754 = vst [vmem:[%s170 + $0x20] sm:$0xff] %v1704
      %1755 = vst [vmem:[%s170 + $0x28] sm:$0xff] %v1736
      %1756 = vst [vmem:[%s170 + $0x30] sm:$0xff] %v1705
      %1757 = vst [vmem:[%s170 + $0x38] sm:$0xff] %v1737
      %p1758 = scmp.lt.s32.totalorder %s14, 1
      %s1759 = scalar_select %p1758, %s14, 1
      %s1760 = smul.addr %s1759, 8
      %s1761 = smul.addr %s1760, 8
      %s1762 = scalar_lea.vmem %s3, %s1761
      // Predicated region
      $region33: #{conv2d_block.1} parent=31 // pred_check
        %p1763 = pneg %p100
      $region34: #{conv2d_block.1} parent=31 // pred_check_branch
        %1765 = sbr.rel (%p1763) target = $region36
      $region35: #{conv2d_block.1} parent=31 // pred_region
        _
      $region36: #{conv2d_block.1} parent=31 // pred_fallthru
        _
    $region32: #{conv2d_block.1} parent=5 // pred_fallthru
      _
    %p1766 = scmp.le.s32.totalorder 2, %s9
    // Predicated region
    $region37: #{conv2d_block.1} parent=5 // pred_check
      %p1767 = pneg %p1766
    $region38: #{conv2d_block.1} parent=5 // pred_check_branch
      %1769 = sbr.rel (%p1767) target = $region40
    $region39: #{conv2d_block.1} parent=5 // pred_region
      %s1770 = ssub.s32 %s9, 2
      // Predicated region
      $region41: #{conv2d_block.1} parent=39 // pred_check
        %p1771 = pneg %p106
      $region42: #{conv2d_block.1} parent=39 // pred_check_branch
        %1773 = sbr.rel (%p1771) target = $region44
      $region43: #{conv2d_block.1} parent=39 // pred_region
        %p1774 = scmp.lt.s32.totalorder %s15, 1
        %s1775 = scalar_select %p1774, %s15, 1
        %s1776 = smul.addr %s1775, 8
        %s1777 = smul.addr %s1776, 8
        %s1778 = scalar_lea.vmem %s3, %s1777
      $region44: #{conv2d_block.1} parent=39 // pred_fallthru
        _
    $region40: #{conv2d_block.1} parent=5 // pred_fallthru
      _
  $region6: #{conv2d_block.1} parent=0 // loop_footer
    %s13 = sadd.s32 1, %s9
  $region7: #{conv2d_block.1} parent=0 // loop_footer_branch
    %8 = sbr.rel target = $region3
  $region8: #{conv2d_block.1} parent=0 // loop_exit
    _

</llo_original>
